<compile_context>
chip_gen: v7x
topology: tpu7x:2x2x1
jax: 0.10.0
libtpu: 0.0.40
codegen_flags: <defaults>
</compile_context>

<pallas_src>
import jax
import jax.numpy as jnp
from jax.experimental import pallas as pl
from jax.experimental.pallas import tpu as pltpu

MLP_HIDDEN = 32          # nn.Linear(input_dim, 32) inside GATLayer.mlp
LN_EPS = 1e-5            # torch LayerNorm default eps
LEAKY_SLOPE = 0.1        # nn.LeakyReLU(0.1)
NEG_BIG = -1e30          # additive mask value for cross-batch attention entries
HIGHEST = jax.lax.Precision.HIGHEST


# --------------------------- parameter packing ---------------------------
def _pack_params(p1, p2):
    """Pack every weight/bias/LN param of both layers into one [rows, 64] f32 slab.

    Row layout (matrix blocks start on 8-row boundaries):
      [0        : F        ]  W1a_cat   [F, H*32]   (layer1 first Linear, heads concat on lanes)
      [F        : F+8      ]  8 vector rows: b1a_cat, ga_cat, bta_cat, b2a_cat,
                                              b1b, gb, btb, b2b   (each padded to 64 lanes)
      [F+8      : F+8+H*32 ]  W2a stacked per head  [H*32, hid1]
      [..       : ..+H*hid1]  W1b       [H*hid1, 32]
      [..       : ..+32    ]  W2b       [32, out_dim]
    """
    H, feat, _ = p1["w1"].shape
    width = H * MLP_HIDDEN                      # 64 lanes

    def pad_cols(m):
        return jnp.pad(m, ((0, 0), (0, width - m.shape[1])))

    def pad_row(v):
        return jnp.pad(v, (0, width - v.shape[0]))

    w1a_cat = jnp.concatenate([p1["w1"][h] for h in range(H)], axis=1)      # [F, 64]
    vec_rows = jnp.stack([
        pad_row(jnp.concatenate([p1["b1"][h, 0] for h in range(H)])),       # b1a_cat
        pad_row(jnp.concatenate([p1["g"][h, 0] for h in range(H)])),        # ga_cat
        pad_row(jnp.concatenate([p1["bt"][h, 0] for h in range(H)])),       # bta_cat
        pad_row(jnp.concatenate([p1["b2"][h, 0] for h in range(H)])),       # b2a_cat
        pad_row(p2["b1"][0, 0]),
        pad_row(p2["g"][0, 0]),
        pad_row(p2["bt"][0, 0]),
        pad_row(p2["b2"][0, 0]),
    ])                                                                      # [8, 64]
    w2a = jnp.concatenate([p1["w2"][h] for h in range(H)], axis=0)          # [H*32, hid1]
    return jnp.concatenate([
        pad_cols(w1a_cat),
        vec_rows,
        pad_cols(w2a),
        pad_cols(p2["w1"][0]),                                              # [H*hid1, 32]
        pad_cols(p2["w2"][0]),                                              # [32, out_dim]
    ], axis=0)


# ------------------------------- kernel ----------------------------------
def _make_gat_kernel(bc, nodes, feat, num_heads, hid1, out_dim):
    BN = bc * nodes
    W1A_W = num_heads * MLP_HIDDEN          # 64: concatenated first-Linear output width
    # static row offsets into the packed parameter slab (must match _pack_params)
    R_W1A = 0
    R_VEC = R_W1A + feat
    R_W2A = R_VEC + 8
    R_W1B = R_W2A + num_heads * MLP_HIDDEN
    R_W2B = R_W1B + num_heads * hid1

    def ln_relu(z, g, bt):
        mu = jnp.mean(z, axis=-1, keepdims=True)
        var = jnp.mean(jnp.square(z - mu), axis=-1, keepdims=True)
        z = (z - mu) * jax.lax.rsqrt(var + LN_EPS) * g + bt
        return jnp.maximum(z, 0.0)

    def kernel(h_ref, masks_ref, p_ref, out_ref):
        x = h_ref[...]                       # [BN, feat]   (all batches stacked on sublanes)
        mult_mask = masks_ref[0]             # [BN, BN] block-diag adjacency (multiplicative)
        add_mask = masks_ref[1]              # [BN, BN] 0 in-block / -1e30 cross-batch

        # ---- hoisted parameter loads: static slices of the single packed slab ----
        w1a = p_ref[R_W1A:R_VEC, :W1A_W]                         # [F, 64]
        b1a = p_ref[R_VEC + 0:R_VEC + 1, :W1A_W]                 # [1, 64]
        ga = p_ref[R_VEC + 1:R_VEC + 2, :W1A_W]
        bta = p_ref[R_VEC + 2:R_VEC + 3, :W1A_W]
        b2a = p_ref[R_VEC + 3:R_VEC + 4, :num_heads * hid1]      # [1, 32]
        b1b = p_ref[R_VEC + 4:R_VEC + 5, :MLP_HIDDEN]            # [1, 32]
        gb = p_ref[R_VEC + 5:R_VEC + 6, :MLP_HIDDEN]
        btb = p_ref[R_VEC + 6:R_VEC + 7, :MLP_HIDDEN]
        b2b = p_ref[R_VEC + 7:R_VEC + 8, :out_dim]               # [1, 8]
        w1b = p_ref[R_W1B:R_W1B + num_heads * hid1, :MLP_HIDDEN]  # [32, 32]
        w2b = p_ref[R_W2B:R_W2B + MLP_HIDDEN, :out_dim]           # [32, 8]

        def attention(z):
            # bmm(z, z.T): contract last axes of both operands (no XLU transpose of z).
            att = jax.lax.dot_general(z, z, (((1,), (1,)), ((), ())),
                                      preferred_element_type=jnp.float32)   # [BN, BN]
            # leaky_relu + multiplicative adjacency mask inside each batch block
            # (reference semantics) + additive -1e30 to kill cross-batch columns.
            att = jnp.where(att > 0, att, LEAKY_SLOPE * att) * mult_mask + add_mask
            att = att - jnp.max(att, axis=-1, keepdims=True)
            e = jnp.exp(att)
            p = e / jnp.sum(e, axis=-1, keepdims=True)           # exact softmax
            return jnp.dot(p, z, preferred_element_type=jnp.float32)        # [BN, D]

        # ---- layer1: both heads' first Linear in one MXU pass ----
        z1 = jnp.dot(x, w1a, preferred_element_type=jnp.float32) + b1a      # [BN, 64]

        # Per-head tail (static unroll, H=2), fused into layer2's first Linear:
        #   cat(e_0, e_1) @ W1b == sum_h e_h @ W1b[h*hid1:(h+1)*hid1]
        z1b = None
        for hd in range(num_heads):
            lo, hi = hd * MLP_HIDDEN, (hd + 1) * MLP_HIDDEN
            z1_h = ln_relu(z1[:, lo:hi], ga[:, lo:hi], bta[:, lo:hi])        # [BN, 32]
            w2a_h = p_ref[R_W2A + hd * MLP_HIDDEN:
                          R_W2A + (hd + 1) * MLP_HIDDEN, :hid1]              # [32, hid1]
            z_h = (jnp.dot(z1_h, w2a_h, preferred_element_type=jnp.float32)
                   + b2a[:, hd * hid1:(hd + 1) * hid1])                      # [BN, hid1]
            y_h = attention(z_h)                                             # [BN, hid1]
            e_h = jnp.where(y_h > 0, y_h, jnp.exp(y_h) - 1.0)                # F.elu
            part = jnp.dot(e_h, w1b[hd * hid1:(hd + 1) * hid1, :],
                           preferred_element_type=jnp.float32)               # [BN, 32]
            z1b = part if z1b is None else z1b + part
        z1b = z1b + b1b

        # ---- layer2 (single head) ----
        z1b = ln_relu(z1b, gb, btb)
        zb = jnp.dot(z1b, w2b, preferred_element_type=jnp.float32) + b2b     # [BN, out_dim]
        y = attention(zb)                                                    # [BN, out_dim]

        # ---- permute(1, 0, 2): one lane-dense store of the full [N, bc*out_dim] slab ----
        out_ref[...] = jnp.concatenate(
            [y[b * nodes:(b + 1) * nodes, :] for b in range(bc)], axis=1)

    return kernel


@jax.jit
def gat_forward(h, params1, params2, mask):
    """GAT.forward: [bc, N, feat] -> [N, bc, out_dim], one fused pallas_call (3 inputs)."""
    bc, nodes, feat = h.shape
    num_heads = params1["w1"].shape[0]
    hid1 = params1["w2"].shape[2]
    out_dim = params2["w2"].shape[2]
    assert params2["w1"].shape[0] == 1, "GAT.layer2 always has a single head"

    BN = bc * nodes
    hflat = h.reshape(BN, feat)                       # free row-major reshape

    # Block-diagonal masks for the batch-folded attention: multiplicative adjacency
    # inside each batch block (matches the torch reference), additive -1e30 off-block
    # so cross-batch probabilities are exactly 0 after softmax.
    eye_b = jnp.eye(bc, dtype=jnp.float32)
    block = jnp.kron(eye_b, jnp.ones((nodes, nodes), jnp.float32))
    masks = jnp.stack([jnp.kron(eye_b, mask.astype(jnp.float32)),
                       (1.0 - block) * NEG_BIG])      # [2, BN, BN]

    packed = _pack_params(params1, params2)           # [152, 64] single param slab

    kernel = _make_gat_kernel(bc, nodes, feat, num_heads, hid1, out_dim)
    args = (hflat, masks, packed)

    def full_spec(shape):
        nd = len(shape)
        return pl.BlockSpec(shape, lambda i, nd=nd: (0,) * nd)

    out2d = pl.pallas_call(
        kernel,
        out_shape=jax.ShapeDtypeStruct((nodes, bc * out_dim), jnp.float32),
        grid_spec=pltpu.PrefetchScalarGridSpec(
            num_scalar_prefetch=0,
            grid=(1,),
            in_specs=[full_spec(a.shape) for a in args],
            out_specs=pl.BlockSpec((nodes, bc * out_dim), lambda i: (0, 0)),
        ),
        compiler_params=pltpu.CompilerParams(
            dimension_semantics=("arbitrary",)),
        # TODO(synk): for real graph sizes, tile the [BN, BN] attention with an online
        # softmax, size tiles from pltpu.get_tpu_info().vmem_capacity_bytes (64 MiB on
        # v7x vs 128 MiB on v5e/v6e), and on v7x expose bc as a leading "parallel" grid
        # axis instead of the sublane fold to use both TensorCores.
    )(*args)

    # permute(1, 0, 2): [N, bc*out_dim] -> [N, bc, out_dim] is a free row-major reshape.
    return out2d.reshape(nodes, bc, out_dim)


# ---------------- pure-JAX reference (for correctness check) ----------------
def _ref_multihead(h, params, mask):
    w1, b1, g, bt, w2, b2 = (params[k] for k in ("w1", "b1", "g", "bt", "w2", "b2"))
    outs = []
    for hd in range(w1.shape[0]):
        z1 = jnp.einsum("bnf,fk->bnk", h, w1[hd], precision=HIGHEST) + b1[hd]
        mu = z1.mean(-1, keepdims=True)
        var = ((z1 - mu) ** 2).mean(-1, keepdims=True)
        z1 = (z1 - mu) * jax.lax.rsqrt(var + LN_EPS) * g[hd] + bt[hd]
        z1 = jnp.maximum(z1, 0.0)
        z = jnp.einsum("bnk,kd->bnd", z1, w2[hd], precision=HIGHEST) + b2[hd]
        att = jnp.einsum("bnd,bmd->bnm", z, z, precision=HIGHEST)
        att = jnp.where(att > 0, att, LEAKY_SLOPE * att) * mask[None]
        att = jax.nn.softmax(att, axis=-1)
        outs.append(jnp.einsum("bnm,bmd->bnd", att, z, precision=HIGHEST))
    return jnp.concatenate(outs, axis=-1)


def _ref_forward(h, p1, p2, mask):
    x = _ref_multihead(h, p1, mask)
    x = jax.nn.elu(x)
    x = _ref_multihead(x, p2, mask)
    return jnp.transpose(x, (1, 0, 2))


# ---------------- deterministic parameter construction ----------------
def init_layer_params(key, num_heads, in_dim, out_dim):
    ks = jax.random.split(key, 4)
    return dict(
        w1=0.2 * jax.random.normal(ks[0], (num_heads, in_dim, MLP_HIDDEN), jnp.float32),
        b1=0.05 * jax.random.normal(ks[1], (num_heads, 1, MLP_HIDDEN), jnp.float32),
        g=jnp.ones((num_heads, 1, MLP_HIDDEN), jnp.float32),
        bt=jnp.zeros((num_heads, 1, MLP_HIDDEN), jnp.float32),
        w2=0.2 * jax.random.normal(ks[2], (num_heads, MLP_HIDDEN, out_dim), jnp.float32),
        b2=0.05 * jax.random.normal(ks[3], (num_heads, 1, out_dim), jnp.float32),
    )
    # NOTE: GATLayer.atten_W is only used by edge_attention_concatenate,
    # which forward() never calls, so it is intentionally omitted.


if __name__ == "__main__":
    # GAT(g, seq_len=4, feature_size=4, hidden_dim=16, out_dim=8, nodes=8, num_heads=2)
    bc, nodes = 2, 8
    seq_len, feature_size = 4, 4
    feat = seq_len * feature_size          # 16
    hidden_dim, out_dim, num_heads = 16, 8, 2

    key = jax.random.PRNGKey(0)
    k_h, k_p1, k_p2 = jax.random.split(key, 3)

    # deterministic adjacency (ring + self loops) standing in for `adj.row/col`
    rows = jnp.arange(nodes)
    mask = jnp.zeros((nodes, nodes), jnp.float32)
    mask = mask.at[rows, rows].set(1.0)
    mask = mask.at[rows, (rows + 1) % nodes].set(1.0)
    mask = mask.at[rows, (rows - 1) % nodes].set(1.0)

    h = jax.random.normal(k_h, (bc, nodes, feat), jnp.float32)

    params1 = init_layer_params(k_p1, num_heads, feat, hidden_dim)            # layer1
    params2 = init_layer_params(k_p2, 1, hidden_dim * num_heads, out_dim)     # layer2

    out = gat_forward(h, params1, params2, mask)
    out = jax.block_until_ready(out)
    assert out.shape == (nodes, bc, out_dim), out.shape

    ref = jax.block_until_ready(_ref_forward(h, params1, params2, mask))
    # Exact softmax in-kernel + HIGHEST-precision reference matmuls: error is ~1e-5;
    # 2e-3 keeps generous margin for f32 accumulation-order differences.
    assert jnp.allclose(out, ref, rtol=2e-3, atol=2e-3), \
        f"max abs err {jnp.max(jnp.abs(out - ref))}"

    print("KERNEL_OK")
</pallas_src>

<mosaic_0001>
module attributes {stable_mosaic.version = 11 : i64} {
  func.func @kernel(%arg0: i32, %arg1: memref<16x16xf32, #tpu.memory_space<vmem>>, %arg2: memref<2x16x16xf32, #tpu.memory_space<vmem>>, %arg3: memref<152x64xf32, #tpu.memory_space<vmem>>, %arg4: memref<8x16xf32, #tpu.memory_space<vmem>>) attributes {dimension_semantics = [#tpu.dimension_semantics<arbitrary>], iteration_bounds = array<i64: 1>, scalar_prefetch = 0 : i64, scratch_operands = 0 : i64, tpu.core_type = #tpu.core_type<tc>, window_params = [{pipeline_mode = #tpu.pipeline_mode<synchronous>, transform_indices = @transform_0, window_bounds = array<i64: 16, 16>}, {pipeline_mode = #tpu.pipeline_mode<synchronous>, transform_indices = @transform_1, window_bounds = array<i64: 2, 16, 16>}, {pipeline_mode = #tpu.pipeline_mode<synchronous>, transform_indices = @transform_2, window_bounds = array<i64: 152, 64>}, {pipeline_mode = #tpu.pipeline_mode<synchronous>, transform_indices = @transform_3, window_bounds = array<i64: 8, 16>}]} {
    %c0 = arith.constant 0 : index
    %c0_0 = arith.constant 0 : index
    %0 = vector.load %arg1[%c0, %c0_0] : memref<16x16xf32, #tpu.memory_space<vmem>>, vector<16x16xf32>
    %c0_1 = arith.constant 0 : index
    %c0_2 = arith.constant 0 : index
    %c0_3 = arith.constant 0 : index
    %1 = vector.load %arg2[%c0_1, %c0_2, %c0_3] : memref<2x16x16xf32, #tpu.memory_space<vmem>>, vector<1x16x16xf32>
    %2 = vector.shape_cast %1 : vector<1x16x16xf32> to vector<16x16xf32>
    %c1 = arith.constant 1 : index
    %c0_4 = arith.constant 0 : index
    %c0_5 = arith.constant 0 : index
    %3 = vector.load %arg2[%c1, %c0_4, %c0_5] : memref<2x16x16xf32, #tpu.memory_space<vmem>>, vector<1x16x16xf32>
    %4 = vector.shape_cast %3 : vector<1x16x16xf32> to vector<16x16xf32>
    %c0_6 = arith.constant 0 : index
    %c0_7 = arith.constant 0 : index
    %5 = vector.load %arg3[%c0_6, %c0_7] : memref<152x64xf32, #tpu.memory_space<vmem>>, vector<16x64xf32>
    %c16 = arith.constant 16 : index
    %c0_8 = arith.constant 0 : index
    %6 = vector.load %arg3[%c16, %c0_8] : memref<152x64xf32, #tpu.memory_space<vmem>>, vector<1x64xf32>
    %c17 = arith.constant 17 : index
    %c0_9 = arith.constant 0 : index
    %7 = vector.load %arg3[%c17, %c0_9] : memref<152x64xf32, #tpu.memory_space<vmem>>, vector<1x64xf32>
    %c18 = arith.constant 18 : index
    %c0_10 = arith.constant 0 : index
    %8 = vector.load %arg3[%c18, %c0_10] : memref<152x64xf32, #tpu.memory_space<vmem>>, vector<1x64xf32>
    %c19 = arith.constant 19 : index
    %c0_11 = arith.constant 0 : index
    %9 = vector.load %arg3[%c19, %c0_11] : memref<152x64xf32, #tpu.memory_space<vmem>>, vector<1x32xf32>
    %c20 = arith.constant 20 : index
    %c0_12 = arith.constant 0 : index
    %10 = vector.load %arg3[%c20, %c0_12] : memref<152x64xf32, #tpu.memory_space<vmem>>, vector<1x32xf32>
    %c21 = arith.constant 21 : index
    %c0_13 = arith.constant 0 : index
    %11 = vector.load %arg3[%c21, %c0_13] : memref<152x64xf32, #tpu.memory_space<vmem>>, vector<1x32xf32>
    %c22 = arith.constant 22 : index
    %c0_14 = arith.constant 0 : index
    %12 = vector.load %arg3[%c22, %c0_14] : memref<152x64xf32, #tpu.memory_space<vmem>>, vector<1x32xf32>
    %c23 = arith.constant 23 : index
    %c0_15 = arith.constant 0 : index
    %13 = vector.load %arg3[%c23, %c0_15] : memref<152x64xf32, #tpu.memory_space<vmem>>, vector<1x8xf32>
    %c88 = arith.constant 88 : index
    %c0_16 = arith.constant 0 : index
    %14 = vector.load %arg3[%c88, %c0_16] : memref<152x64xf32, #tpu.memory_space<vmem>>, vector<32x32xf32>
    %c120 = arith.constant 120 : index
    %c0_17 = arith.constant 0 : index
    %15 = vector.load %arg3[%c120, %c0_17] : memref<152x64xf32, #tpu.memory_space<vmem>>, vector<32x8xf32>
    %cst = arith.constant dense<0.000000e+00> : vector<16x64xf32>
    %16 = tpu.matmul %0, %5, %cst {dimension_numbers = #tpu.dot_dimension_numbers<[1], [0], [0], [1], [0, 0, 1, 1], [], []>} : vector<16x16xf32>, vector<16x64xf32>, vector<16x64xf32> -> vector<16x64xf32>
    %17 = vector.broadcast %6 : vector<1x64xf32> to vector<16x64xf32>
    %18 = arith.addf %16, %17 : vector<16x64xf32>
    %19 = vector.extract_strided_slice %18 {offsets = [0, 0], sizes = [16, 32], strides = [1, 1]} : vector<16x64xf32> to vector<16x32xf32>
    %20 = vector.extract_strided_slice %7 {offsets = [0, 0], sizes = [1, 32], strides = [1, 1]} : vector<1x64xf32> to vector<1x32xf32>
    %21 = vector.extract_strided_slice %8 {offsets = [0, 0], sizes = [1, 32], strides = [1, 1]} : vector<1x64xf32> to vector<1x32xf32>
    %cst_18 = arith.constant dense<0.000000e+00> : vector<16xf32>
    %22 = vector.multi_reduction <add>, %19, %cst_18 [1] : vector<16x32xf32> to vector<16xf32>
    %23 = vector.shape_cast %22 : vector<16xf32> to vector<16x1xf32>
    %cst_19 = arith.constant 3.200000e+01 : f32
    %24 = vector.broadcast %cst_19 : f32 to vector<16x1xf32>
    %25 = arith.divf %23, %24 : vector<16x1xf32>
    %26 = vector.broadcast %25 : vector<16x1xf32> to vector<16x32xf32>
    %27 = arith.subf %19, %26 : vector<16x32xf32>
    %28 = arith.mulf %27, %27 : vector<16x32xf32>
    %cst_20 = arith.constant dense<0.000000e+00> : vector<16xf32>
    %29 = vector.multi_reduction <add>, %28, %cst_20 [1] : vector<16x32xf32> to vector<16xf32>
    %30 = vector.shape_cast %29 : vector<16xf32> to vector<16x1xf32>
    %cst_21 = arith.constant 3.200000e+01 : f32
    %31 = vector.broadcast %cst_21 : f32 to vector<16x1xf32>
    %32 = arith.divf %30, %31 : vector<16x1xf32>
    %33 = vector.broadcast %25 : vector<16x1xf32> to vector<16x32xf32>
    %34 = arith.subf %19, %33 : vector<16x32xf32>
    %cst_22 = arith.constant 9.99999974E-6 : f32
    %35 = vector.broadcast %cst_22 : f32 to vector<16x1xf32>
    %36 = arith.addf %32, %35 : vector<16x1xf32>
    %37 = math.rsqrt %36 : vector<16x1xf32>
    %38 = vector.broadcast %37 : vector<16x1xf32> to vector<16x32xf32>
    %39 = arith.mulf %34, %38 : vector<16x32xf32>
    %40 = vector.broadcast %20 : vector<1x32xf32> to vector<16x32xf32>
    %41 = arith.mulf %39, %40 : vector<16x32xf32>
    %42 = vector.broadcast %21 : vector<1x32xf32> to vector<16x32xf32>
    %43 = arith.addf %41, %42 : vector<16x32xf32>
    %cst_23 = arith.constant 0.000000e+00 : f32
    %44 = vector.broadcast %cst_23 : f32 to vector<16x32xf32>
    %45 = arith.maximumf %43, %44 : vector<16x32xf32>
    %c24 = arith.constant 24 : index
    %c0_24 = arith.constant 0 : index
    %46 = vector.load %arg3[%c24, %c0_24] : memref<152x64xf32, #tpu.memory_space<vmem>>, vector<32x16xf32>
    %cst_25 = arith.constant dense<0.000000e+00> : vector<16x16xf32>
    %47 = tpu.matmul %45, %46, %cst_25 {dimension_numbers = #tpu.dot_dimension_numbers<[1], [0], [0], [1], [0, 0, 1, 1], [], []>} : vector<16x32xf32>, vector<32x16xf32>, vector<16x16xf32> -> vector<16x16xf32>
    %48 = vector.extract_strided_slice %9 {offsets = [0, 0], sizes = [1, 16], strides = [1, 1]} : vector<1x32xf32> to vector<1x16xf32>
    %49 = vector.broadcast %48 : vector<1x16xf32> to vector<16x16xf32>
    %50 = arith.addf %47, %49 : vector<16x16xf32>
    %cst_26 = arith.constant dense<0.000000e+00> : vector<16x16xf32>
    %51 = tpu.matmul %50, %50, %cst_26 {dimension_numbers = #tpu.dot_dimension_numbers<[1], [1], [0], [0], [0, 0, 1, 0], [], []>} : vector<16x16xf32>, vector<16x16xf32>, vector<16x16xf32> -> vector<16x16xf32>
    %cst_27 = arith.constant 0.000000e+00 : f32
    %52 = vector.broadcast %cst_27 : f32 to vector<16x16xf32>
    %53 = arith.cmpf ogt, %51, %52 : vector<16x16xf32>
    %cst_28 = arith.constant 1.000000e-01 : f32
    %54 = vector.broadcast %cst_28 : f32 to vector<16x16xf32>
    %55 = arith.mulf %54, %51 : vector<16x16xf32>
    %56 = arith.select %53, %51, %55 : vector<16x16xi1>, vector<16x16xf32>
    %57 = arith.mulf %56, %2 : vector<16x16xf32>
    %58 = arith.addf %57, %4 : vector<16x16xf32>
    %cst_29 = arith.constant dense<0xFF800000> : vector<16xf32>
    %59 = vector.multi_reduction <maximumf>, %58, %cst_29 [1] : vector<16x16xf32> to vector<16xf32>
    %60 = vector.shape_cast %59 : vector<16xf32> to vector<16x1xf32>
    %61 = vector.broadcast %60 : vector<16x1xf32> to vector<16x16xf32>
    %62 = arith.subf %58, %61 : vector<16x16xf32>
    %63 = math.exp %62 : vector<16x16xf32>
    %cst_30 = arith.constant dense<0.000000e+00> : vector<16xf32>
    %64 = vector.multi_reduction <add>, %63, %cst_30 [1] : vector<16x16xf32> to vector<16xf32>
    %65 = vector.shape_cast %64 : vector<16xf32> to vector<16x1xf32>
    %66 = vector.broadcast %65 : vector<16x1xf32> to vector<16x16xf32>
    %67 = arith.divf %63, %66 : vector<16x16xf32>
    %cst_31 = arith.constant dense<0.000000e+00> : vector<16x16xf32>
    %68 = tpu.matmul %67, %50, %cst_31 {dimension_numbers = #tpu.dot_dimension_numbers<[1], [0], [0], [1], [0, 0, 1, 1], [], []>} : vector<16x16xf32>, vector<16x16xf32>, vector<16x16xf32> -> vector<16x16xf32>
    %cst_32 = arith.constant 0.000000e+00 : f32
    %69 = vector.broadcast %cst_32 : f32 to vector<16x16xf32>
    %70 = arith.cmpf ogt, %68, %69 : vector<16x16xf32>
    %71 = math.exp %68 : vector<16x16xf32>
    %cst_33 = arith.constant 1.000000e+00 : f32
    %72 = vector.broadcast %cst_33 : f32 to vector<16x16xf32>
    %73 = arith.subf %71, %72 : vector<16x16xf32>
    %74 = arith.select %70, %68, %73 : vector<16x16xi1>, vector<16x16xf32>
    %75 = vector.extract_strided_slice %14 {offsets = [0, 0], sizes = [16, 32], strides = [1, 1]} : vector<32x32xf32> to vector<16x32xf32>
    %cst_34 = arith.constant dense<0.000000e+00> : vector<16x32xf32>
    %76 = tpu.matmul %74, %75, %cst_34 {dimension_numbers = #tpu.dot_dimension_numbers<[1], [0], [0], [1], [0, 0, 1, 1], [], []>} : vector<16x16xf32>, vector<16x32xf32>, vector<16x32xf32> -> vector<16x32xf32>
    %77 = vector.extract_strided_slice %18 {offsets = [0, 32], sizes = [16, 32], strides = [1, 1]} : vector<16x64xf32> to vector<16x32xf32>
    %78 = vector.extract_strided_slice %7 {offsets = [0, 32], sizes = [1, 32], strides = [1, 1]} : vector<1x64xf32> to vector<1x32xf32>
    %79 = vector.extract_strided_slice %8 {offsets = [0, 32], sizes = [1, 32], strides = [1, 1]} : vector<1x64xf32> to vector<1x32xf32>
    %cst_35 = arith.constant dense<0.000000e+00> : vector<16xf32>
    %80 = vector.multi_reduction <add>, %77, %cst_35 [1] : vector<16x32xf32> to vector<16xf32>
    %81 = vector.shape_cast %80 : vector<16xf32> to vector<16x1xf32>
    %cst_36 = arith.constant 3.200000e+01 : f32
    %82 = vector.broadcast %cst_36 : f32 to vector<16x1xf32>
    %83 = arith.divf %81, %82 : vector<16x1xf32>
    %84 = vector.broadcast %83 : vector<16x1xf32> to vector<16x32xf32>
    %85 = arith.subf %77, %84 : vector<16x32xf32>
    %86 = arith.mulf %85, %85 : vector<16x32xf32>
    %cst_37 = arith.constant dense<0.000000e+00> : vector<16xf32>
    %87 = vector.multi_reduction <add>, %86, %cst_37 [1] : vector<16x32xf32> to vector<16xf32>
    %88 = vector.shape_cast %87 : vector<16xf32> to vector<16x1xf32>
    %cst_38 = arith.constant 3.200000e+01 : f32
    %89 = vector.broadcast %cst_38 : f32 to vector<16x1xf32>
    %90 = arith.divf %88, %89 : vector<16x1xf32>
    %91 = vector.broadcast %83 : vector<16x1xf32> to vector<16x32xf32>
    %92 = arith.subf %77, %91 : vector<16x32xf32>
    %cst_39 = arith.constant 9.99999974E-6 : f32
    %93 = vector.broadcast %cst_39 : f32 to vector<16x1xf32>
    %94 = arith.addf %90, %93 : vector<16x1xf32>
    %95 = math.rsqrt %94 : vector<16x1xf32>
    %96 = vector.broadcast %95 : vector<16x1xf32> to vector<16x32xf32>
    %97 = arith.mulf %92, %96 : vector<16x32xf32>
    %98 = vector.broadcast %78 : vector<1x32xf32> to vector<16x32xf32>
    %99 = arith.mulf %97, %98 : vector<16x32xf32>
    %100 = vector.broadcast %79 : vector<1x32xf32> to vector<16x32xf32>
    %101 = arith.addf %99, %100 : vector<16x32xf32>
    %cst_40 = arith.constant 0.000000e+00 : f32
    %102 = vector.broadcast %cst_40 : f32 to vector<16x32xf32>
    %103 = arith.maximumf %101, %102 : vector<16x32xf32>
    %c56 = arith.constant 56 : index
    %c0_41 = arith.constant 0 : index
    %104 = vector.load %arg3[%c56, %c0_41] : memref<152x64xf32, #tpu.memory_space<vmem>>, vector<32x16xf32>
    %cst_42 = arith.constant dense<0.000000e+00> : vector<16x16xf32>
    %105 = tpu.matmul %103, %104, %cst_42 {dimension_numbers = #tpu.dot_dimension_numbers<[1], [0], [0], [1], [0, 0, 1, 1], [], []>} : vector<16x32xf32>, vector<32x16xf32>, vector<16x16xf32> -> vector<16x16xf32>
    %106 = vector.extract_strided_slice %9 {offsets = [0, 16], sizes = [1, 16], strides = [1, 1]} : vector<1x32xf32> to vector<1x16xf32>
    %107 = vector.broadcast %106 : vector<1x16xf32> to vector<16x16xf32>
    %108 = arith.addf %105, %107 : vector<16x16xf32>
    %cst_43 = arith.constant dense<0.000000e+00> : vector<16x16xf32>
    %109 = tpu.matmul %108, %108, %cst_43 {dimension_numbers = #tpu.dot_dimension_numbers<[1], [1], [0], [0], [0, 0, 1, 0], [], []>} : vector<16x16xf32>, vector<16x16xf32>, vector<16x16xf32> -> vector<16x16xf32>
    %cst_44 = arith.constant 0.000000e+00 : f32
    %110 = vector.broadcast %cst_44 : f32 to vector<16x16xf32>
    %111 = arith.cmpf ogt, %109, %110 : vector<16x16xf32>
    %cst_45 = arith.constant 1.000000e-01 : f32
    %112 = vector.broadcast %cst_45 : f32 to vector<16x16xf32>
    %113 = arith.mulf %112, %109 : vector<16x16xf32>
    %114 = arith.select %111, %109, %113 : vector<16x16xi1>, vector<16x16xf32>
    %115 = arith.mulf %114, %2 : vector<16x16xf32>
    %116 = arith.addf %115, %4 : vector<16x16xf32>
    %cst_46 = arith.constant dense<0xFF800000> : vector<16xf32>
    %117 = vector.multi_reduction <maximumf>, %116, %cst_46 [1] : vector<16x16xf32> to vector<16xf32>
    %118 = vector.shape_cast %117 : vector<16xf32> to vector<16x1xf32>
    %119 = vector.broadcast %118 : vector<16x1xf32> to vector<16x16xf32>
    %120 = arith.subf %116, %119 : vector<16x16xf32>
    %121 = math.exp %120 : vector<16x16xf32>
    %cst_47 = arith.constant dense<0.000000e+00> : vector<16xf32>
    %122 = vector.multi_reduction <add>, %121, %cst_47 [1] : vector<16x16xf32> to vector<16xf32>
    %123 = vector.shape_cast %122 : vector<16xf32> to vector<16x1xf32>
    %124 = vector.broadcast %123 : vector<16x1xf32> to vector<16x16xf32>
    %125 = arith.divf %121, %124 : vector<16x16xf32>
    %cst_48 = arith.constant dense<0.000000e+00> : vector<16x16xf32>
    %126 = tpu.matmul %125, %108, %cst_48 {dimension_numbers = #tpu.dot_dimension_numbers<[1], [0], [0], [1], [0, 0, 1, 1], [], []>} : vector<16x16xf32>, vector<16x16xf32>, vector<16x16xf32> -> vector<16x16xf32>
    %cst_49 = arith.constant 0.000000e+00 : f32
    %127 = vector.broadcast %cst_49 : f32 to vector<16x16xf32>
    %128 = arith.cmpf ogt, %126, %127 : vector<16x16xf32>
    %129 = math.exp %126 : vector<16x16xf32>
    %cst_50 = arith.constant 1.000000e+00 : f32
    %130 = vector.broadcast %cst_50 : f32 to vector<16x16xf32>
    %131 = arith.subf %129, %130 : vector<16x16xf32>
    %132 = arith.select %128, %126, %131 : vector<16x16xi1>, vector<16x16xf32>
    %133 = vector.extract_strided_slice %14 {offsets = [16, 0], sizes = [16, 32], strides = [1, 1]} : vector<32x32xf32> to vector<16x32xf32>
    %cst_51 = arith.constant dense<0.000000e+00> : vector<16x32xf32>
    %134 = tpu.matmul %132, %133, %cst_51 {dimension_numbers = #tpu.dot_dimension_numbers<[1], [0], [0], [1], [0, 0, 1, 1], [], []>} : vector<16x16xf32>, vector<16x32xf32>, vector<16x32xf32> -> vector<16x32xf32>
    %135 = arith.addf %76, %134 : vector<16x32xf32>
    %136 = vector.broadcast %10 : vector<1x32xf32> to vector<16x32xf32>
    %137 = arith.addf %135, %136 : vector<16x32xf32>
    %cst_52 = arith.constant dense<0.000000e+00> : vector<16xf32>
    %138 = vector.multi_reduction <add>, %137, %cst_52 [1] : vector<16x32xf32> to vector<16xf32>
    %139 = vector.shape_cast %138 : vector<16xf32> to vector<16x1xf32>
    %cst_53 = arith.constant 3.200000e+01 : f32
    %140 = vector.broadcast %cst_53 : f32 to vector<16x1xf32>
    %141 = arith.divf %139, %140 : vector<16x1xf32>
    %142 = vector.broadcast %141 : vector<16x1xf32> to vector<16x32xf32>
    %143 = arith.subf %137, %142 : vector<16x32xf32>
    %144 = arith.mulf %143, %143 : vector<16x32xf32>
    %cst_54 = arith.constant dense<0.000000e+00> : vector<16xf32>
    %145 = vector.multi_reduction <add>, %144, %cst_54 [1] : vector<16x32xf32> to vector<16xf32>
    %146 = vector.shape_cast %145 : vector<16xf32> to vector<16x1xf32>
    %cst_55 = arith.constant 3.200000e+01 : f32
    %147 = vector.broadcast %cst_55 : f32 to vector<16x1xf32>
    %148 = arith.divf %146, %147 : vector<16x1xf32>
    %149 = vector.broadcast %141 : vector<16x1xf32> to vector<16x32xf32>
    %150 = arith.subf %137, %149 : vector<16x32xf32>
    %cst_56 = arith.constant 9.99999974E-6 : f32
    %151 = vector.broadcast %cst_56 : f32 to vector<16x1xf32>
    %152 = arith.addf %148, %151 : vector<16x1xf32>
    %153 = math.rsqrt %152 : vector<16x1xf32>
    %154 = vector.broadcast %153 : vector<16x1xf32> to vector<16x32xf32>
    %155 = arith.mulf %150, %154 : vector<16x32xf32>
    %156 = vector.broadcast %11 : vector<1x32xf32> to vector<16x32xf32>
    %157 = arith.mulf %155, %156 : vector<16x32xf32>
    %158 = vector.broadcast %12 : vector<1x32xf32> to vector<16x32xf32>
    %159 = arith.addf %157, %158 : vector<16x32xf32>
    %cst_57 = arith.constant 0.000000e+00 : f32
    %160 = vector.broadcast %cst_57 : f32 to vector<16x32xf32>
    %161 = arith.maximumf %159, %160 : vector<16x32xf32>
    %cst_58 = arith.constant dense<0.000000e+00> : vector<16x8xf32>
    %162 = tpu.matmul %161, %15, %cst_58 {dimension_numbers = #tpu.dot_dimension_numbers<[1], [0], [0], [1], [0, 0, 1, 1], [], []>} : vector<16x32xf32>, vector<32x8xf32>, vector<16x8xf32> -> vector<16x8xf32>
    %163 = vector.broadcast %13 : vector<1x8xf32> to vector<16x8xf32>
    %164 = arith.addf %162, %163 : vector<16x8xf32>
    %cst_59 = arith.constant dense<0.000000e+00> : vector<16x16xf32>
    %165 = tpu.matmul %164, %164, %cst_59 {dimension_numbers = #tpu.dot_dimension_numbers<[1], [1], [0], [0], [0, 0, 1, 0], [], []>} : vector<16x8xf32>, vector<16x8xf32>, vector<16x16xf32> -> vector<16x16xf32>
    %cst_60 = arith.constant 0.000000e+00 : f32
    %166 = vector.broadcast %cst_60 : f32 to vector<16x16xf32>
    %167 = arith.cmpf ogt, %165, %166 : vector<16x16xf32>
    %cst_61 = arith.constant 1.000000e-01 : f32
    %168 = vector.broadcast %cst_61 : f32 to vector<16x16xf32>
    %169 = arith.mulf %168, %165 : vector<16x16xf32>
    %170 = arith.select %167, %165, %169 : vector<16x16xi1>, vector<16x16xf32>
    %171 = arith.mulf %170, %2 : vector<16x16xf32>
    %172 = arith.addf %171, %4 : vector<16x16xf32>
    %cst_62 = arith.constant dense<0xFF800000> : vector<16xf32>
    %173 = vector.multi_reduction <maximumf>, %172, %cst_62 [1] : vector<16x16xf32> to vector<16xf32>
    %174 = vector.shape_cast %173 : vector<16xf32> to vector<16x1xf32>
    %175 = vector.broadcast %174 : vector<16x1xf32> to vector<16x16xf32>
    %176 = arith.subf %172, %175 : vector<16x16xf32>
    %177 = math.exp %176 : vector<16x16xf32>
    %cst_63 = arith.constant dense<0.000000e+00> : vector<16xf32>
    %178 = vector.multi_reduction <add>, %177, %cst_63 [1] : vector<16x16xf32> to vector<16xf32>
    %179 = vector.shape_cast %178 : vector<16xf32> to vector<16x1xf32>
    %180 = vector.broadcast %179 : vector<16x1xf32> to vector<16x16xf32>
    %181 = arith.divf %177, %180 : vector<16x16xf32>
    %cst_64 = arith.constant dense<0.000000e+00> : vector<16x8xf32>
    %182 = tpu.matmul %181, %164, %cst_64 {dimension_numbers = #tpu.dot_dimension_numbers<[1], [0], [0], [1], [0, 0, 1, 1], [], []>} : vector<16x16xf32>, vector<16x8xf32>, vector<16x8xf32> -> vector<16x8xf32>
    %183 = vector.extract_strided_slice %182 {offsets = [0, 0], sizes = [8, 8], strides = [1, 1]} : vector<16x8xf32> to vector<8x8xf32>
    %184 = vector.extract_strided_slice %182 {offsets = [8, 0], sizes = [8, 8], strides = [1, 1]} : vector<16x8xf32> to vector<8x8xf32>
    %185 = tpu.concatenate %183, %184 in 1 : vector<8x8xf32>, vector<8x8xf32> -> vector<8x16xf32>
    %c0_65 = arith.constant 0 : index
    %c0_66 = arith.constant 0 : index
    %186 = vector.load %arg4[%c0_65, %c0_66] : memref<8x16xf32, #tpu.memory_space<vmem>>, vector<8x16xf32>
    tpu.vector_store %arg4[%c0_65, %c0_66], %185 {strides = array<i32>} : memref<8x16xf32, #tpu.memory_space<vmem>>, vector<8x16xf32>,
    return
  }
  func.func @transform_0(%arg0: i32) -> (i32, i32) {
    %c0_i32 = arith.constant 0 : i32
    %c0_i32_0 = arith.constant 0 : i32
    %c0_i32_1 = arith.constant 0 : i32
    return %c0_i32, %c0_i32_0 : i32, i32
  }
  func.func @transform_1(%arg0: i32) -> (i32, i32, i32) {
    %c0_i32 = arith.constant 0 : i32
    %c0_i32_0 = arith.constant 0 : i32
    %c0_i32_1 = arith.constant 0 : i32
    %c0_i32_2 = arith.constant 0 : i32
    return %c0_i32, %c0_i32_0, %c0_i32_1 : i32, i32, i32
  }
  func.func @transform_2(%arg0: i32) -> (i32, i32) {
    %c0_i32 = arith.constant 0 : i32
    %c0_i32_0 = arith.constant 0 : i32
    %c0_i32_1 = arith.constant 0 : i32
    return %c0_i32, %c0_i32_0 : i32, i32
  }
  func.func @transform_3(%arg0: i32) -> (i32, i32) {
    %c0_i32 = arith.constant 0 : i32
    %c0_i32_0 = arith.constant 0 : i32
    %c0_i32_1 = arith.constant 0 : i32
    return %c0_i32, %c0_i32_0 : i32, i32
  }
}

</mosaic_0001>

<llo_original>
// kernel: gat_forward.1
$region0: #{gat_forward.1}
  #allocation0 [shape = 'u32[]', space=smem, size = 0x4, offset = 0x4, fixed_abs, tag = 'smem constant byte address 0x4 - core index']
  #allocation1 [shape = 'u32[144,128]{1,0:T(1,128)}', space=vmem, size = 0x12000, scoped, tag = 'internal scratch']
  %s0 = inlined_call_operand.vmem [shape: f32[16,16], index: 0, kind: input, shape index: {}]
  %s1 = inlined_call_operand.vmem [shape: f32[2,16,16], index: 1, kind: input, shape index: {}]
  %s2 = inlined_call_operand.vmem [shape: f32[152,64], index: 2, kind: input, shape index: {}]
  %s3 = inlined_call_operand.vmem [shape: f32[8,16], index: 3, kind: output, shape index: {}]
  %s4 = sld [smem:[#allocation0]]
  $region22: #{gat_forward.1} parent=0
    _
  %s6 = ssub.s32 1, %s4
  %s7 = scalar_select 0, %s6, %s4
  // Predicated region
  $region2: #{gat_forward.1} parent=0 // pred_check
    _
  $region3: #{gat_forward.1} parent=0 // pred_check_branch
    %9 = sbr.rel (0) target = $region5
  $region4: #{gat_forward.1} parent=0 // pred_region
    _
  $region5: #{gat_forward.1} parent=0 // pred_fallthru
    _
  // Predicated region
  $region6: #{gat_forward.1} parent=0 // pred_check
    _
  $region7: #{gat_forward.1} parent=0 // pred_check_branch
    %11 = sbr.rel (0) target = $region9
  $region8: #{gat_forward.1} parent=0 // pred_region
    _
  $region9: #{gat_forward.1} parent=0 // pred_fallthru
    _
  // Predicated region
  $region10: #{gat_forward.1} parent=0 // pred_check
    _
  $region11: #{gat_forward.1} parent=0 // pred_check_branch
    %13 = sbr.rel (0) target = $region13
  $region12: #{gat_forward.1} parent=0 // pred_region
    _
  $region13: #{gat_forward.1} parent=0 // pred_fallthru
    _
  %v14 = vld [vmem:[%s0] sm:$0xff]
  %v15 = vld [vmem:[%s0 + $0x8] sm:$0xff]
  %v16 = vld [vmem:[%s1] sm:$0xff]
  %v17 = vld [vmem:[%s1 + $0x8] sm:$0xff]
  %s18 = scalar_lea.vmem %s1, 16
  %v19 = vld [vmem:[%s18] sm:$0xff]
  %v20 = vld [vmem:[%s18 + $0x8] sm:$0xff]
  %v21 = vld [vmem:[%s2] sm:$0xff]
  %v22 = vld [vmem:[%s2 + $0x8] sm:$0xff]
  %v23 = vld [vmem:[%s2 + $0x10] sm:$0x1]
  %v24 = vld [vmem:[%s2 + $0x11] sm:$0x1]
  %v25 = vld [vmem:[%s2 + $0x12] sm:$0x1]
  %v26 = vld [vmem:[%s2 + $0x13] sm:$0x1]
  %v27 = vld [vmem:[%s2 + $0x14] sm:$0x1]
  %v28 = vld [vmem:[%s2 + $0x15] sm:$0x1]
  %v29 = vld [vmem:[%s2 + $0x16] sm:$0x1]
  %v30 = vld [vmem:[%s2 + $0x17] sm:$0x1]
  %v31 = vld [vmem:[%s2 + $0x58] sm:$0xff]
  %v32 = vld [vmem:[%s2 + $0x60] sm:$0xff]
  %v33 = vld [vmem:[%s2 + $0x68] sm:$0xff]
  %v34 = vld [vmem:[%s2 + $0x70] sm:$0xff]
  %v35 = vld [vmem:[%s2 + $0x78] sm:$0xff]
  %v36 = vld [vmem:[%s2 + $0x80] sm:$0xff]
  %v37 = vld [vmem:[%s2 + $0x88] sm:$0xff]
  %v38 = vld [vmem:[%s2 + $0x90] sm:$0xff]
  %v39 = vlaneseq
  %v40 = vshrl.u32 %v39, 7
  %v41 = vsub.s32 0, %v40
  %v42 = vrot.slane %v23, %v41
  %vm43 = vcmask 130048
  %v45 = vsel %vm43, %v14, 0
  %v48 = vsel %vm43, %v15, 0
  %50 = vmatprep.subr.mxu0 0.0
  %51 = vmatpush1.msra.mxu0 %v21
  %52 = vmatprep.subr.mxu0 0.0
  %53 = vmatpush1.msra.mxu0 %v22
  %54 = vmatprep.subr.mxu0 0.0
  %55 = vmatpush1.msra.mxu0 0.0
  %56 = vmatprep.subr.mxu0 0.0
  %57 = vmatpush1.msra.mxu0 0.0
  %58 = vmatprep.subr.mxu0 0.0
  %59 = vmatpush1.msra.mxu0 0.0
  %60 = vmatprep.subr.mxu0 0.0
  %61 = vmatpush1.msra.mxu0 0.0
  %62 = vmatprep.subr.mxu0 0.0
  %63 = vmatpush1.msra.mxu0 0.0
  %64 = vmatprep.subr.mxu0 0.0
  %65 = vmatpush1.msra.mxu0 0.0
  %66 = vmatprep.subr.mxu0 0.0
  %67 = vmatpush1.msra.mxu0 0.0
  %68 = vmatprep.subr.mxu0 0.0
  %69 = vmatpush1.msra.mxu0 0.0
  %70 = vmatprep.subr.mxu0 0.0
  %71 = vmatpush1.msra.mxu0 0.0
  %72 = vmatprep.subr.mxu0 0.0
  %73 = vmatpush1.msra.mxu0 0.0
  %74 = vmatprep.subr.mxu0 0.0
  %75 = vmatpush1.msra.mxu0 0.0
  %76 = vmatprep.subr.mxu0 0.0
  %77 = vmatpush1.msra.mxu0 0.0
  %78 = vmatprep.subr.mxu0 0.0
  %79 = vmatpush1.msra.mxu0 0.0
  %80 = vmatprep.subr.mxu0 0.0
  %81 = vmatpush1.msra.mxu0 0.0
  %82 = vmatprep.subr.mxu0 0.0
  %83 = vmatpush1.msra.mxu0 0.0
  %84 = vmatprep.subr.mxu0 0.0
  %85 = vmatpush1.msra.mxu0 0.0
  %86 = vmatprep.subr.mxu0 0.0
  %87 = vmatpush1.msra.mxu0 0.0
  %88 = vmatprep.subr.mxu0 0.0
  %89 = vmatpush1.msra.mxu0 0.0
  %90 = vmatprep.subr.mxu0 0.0
  %91 = vmatpush1.msra.mxu0 0.0
  %92 = vmatprep.subr.mxu0 0.0
  %93 = vmatpush1.msra.mxu0 0.0
  %94 = vmatprep.subr.mxu0 0.0
  %95 = vmatpush1.msra.mxu0 0.0
  %96 = vmatprep.subr.mxu0 0.0
  %97 = vmatpush1.msra.mxu0 0.0
  %98 = vmatprep.subr.mxu0 0.0
  %99 = vmatpush1.msra.mxu0 0.0
  %100 = vmatprep.subr.mxu0 0.0
  %101 = vmatpush1.msra.mxu0 0.0
  %102 = vmatprep.subr.mxu0 0.0
  %103 = vmatpush1.msra.mxu0 0.0
  %104 = vmatprep.subr.mxu0 0.0
  %105 = vmatpush1.msra.mxu0 0.0
  %106 = vmatprep.subr.mxu0 0.0
  %107 = vmatpush1.msra.mxu0 0.0
  %108 = vmatprep.subr.mxu0 0.0
  %109 = vmatpush1.msra.mxu0 0.0
  %110 = vmatprep.subr.mxu0 0.0
  %111 = vmatpush1.msra.mxu0 0.0
  %112 = vmatprep.subr.mxu0 0.0
  %113 = vmatpush1.msra.mxu0 0.0
  %114 = vmatprep.mubr.f32.mxu0 0.0
  %115 = vmatmul.mubr.f32.gmra.mrb[0].mxu0 %v45
  %v116 = vpop.f32.mrb[0].mxu0
  %v117 = vadd.f32 %v42, %v116
  %v118 = vpop.f32.mrb[0].mxu0
  %119 = vmatprep.mubr.f32.mxu0 0.0
  %120 = vmatmul.mubr.f32.gmra.mrb[0].mxu0 %v48
  %v121 = vpop.f32.mrb[0].mxu0
  %v122 = vadd.f32 %v42, %v121
  %v123 = vpop.f32.mrb[0].mxu0
  %124 = vdwg.mxu0
  %vm125 = vcmask 261120
  %v126 = vsel %vm125, %v117, 0.0
  %127 = vadd.xlane.f32.xlu0 %v126
  %v128 = vpop.xlane.xlu0 %127
  %v129 = vsel %vm125, %v122, 0.0
  %130 = vadd.xlane.f32.xlu0 %v129
  %v131 = vpop.xlane.xlu0 %130
  %v132 = vrcp.pop 32.0
  %v133 = vmul.f32 %v128, %v132
  %v134 = vmul.f32 %v131, %v132
  %v135 = vsub.f32 %v117, %v133
  %v136 = vsub.f32 %v122, %v134
  %v137 = vmul.f32 %v135, %v135
  %v138 = vmul.f32 %v136, %v136
  %v139 = vsel %vm125, %v137, 0.0
  %140 = vadd.xlane.f32.xlu0 %v139
  %v141 = vpop.xlane.xlu0 %140
  %v142 = vsel %vm125, %v138, 0.0
  %143 = vadd.xlane.f32.xlu0 %v142
  %v144 = vpop.xlane.xlu0 %143
  %v145 = vmul.f32 %v141, %v132
  %v146 = vmul.f32 %v144, %v132
  %v147 = vadd.f32 %v145, 1e-05
  %v148 = vadd.f32 %v146, 1e-05
  %v149 = vrsqrt.pop %v147
  %v150 = vrsqrt.pop %v148
  %v151 = vmul.f32 %v135, %v149
  %v152 = vmul.f32 %v136, %v150
  %v153 = vlaneseq
  %v154 = vshrl.u32 %v153, 7
  %v155 = vsub.s32 0, %v154
  %v156 = vrot.slane %v24, %v155
  %v157 = vmul.f32 %v151, %v156
  %v158 = vmul.f32 %v152, %v156
  %v159 = vlaneseq
  %v160 = vshrl.u32 %v159, 7
  %v161 = vsub.s32 0, %v160
  %v162 = vrot.slane %v25, %v161
  %v163 = vadd.f32 %v157, %v162
  %v164 = vadd.f32 %v158, %v162
  %v165 = vmax.f32 %v163, 0.0
  %v166 = vmax.f32 %v164, 0.0
  %v167 = vld [vmem:[%s2 + $0x18] sm:$0xff]
  %v168 = vld [vmem:[%s2 + $0x20] sm:$0xff]
  %v169 = vld [vmem:[%s2 + $0x28] sm:$0xff]
  %v170 = vld [vmem:[%s2 + $0x30] sm:$0xff]
  %v171 = vlaneseq
  %v172 = vshrl.u32 %v171, 7
  %v173 = vsub.s32 0, %v172
  %v174 = vrot.slane %v26, %v173
  %v176 = vsel %vm125, %v165, 0
  %v179 = vsel %vm125, %v166, 0
  %181 = vmatprep.subr.mxu0 0.0
  %182 = vmatpush1.msra.mxu0 %v167
  %183 = vmatprep.subr.mxu0 0.0
  %184 = vmatpush1.msra.mxu0 %v168
  %185 = vmatprep.subr.mxu0 0.0
  %186 = vmatpush1.msra.mxu0 %v169
  %187 = vmatprep.subr.mxu0 0.0
  %188 = vmatpush1.msra.mxu0 %v170
  %189 = vmatprep.subr.mxu0 0.0
  %190 = vmatpush1.msra.mxu0 0.0
  %191 = vmatprep.subr.mxu0 0.0
  %192 = vmatpush1.msra.mxu0 0.0
  %193 = vmatprep.subr.mxu0 0.0
  %194 = vmatpush1.msra.mxu0 0.0
  %195 = vmatprep.subr.mxu0 0.0
  %196 = vmatpush1.msra.mxu0 0.0
  %197 = vmatprep.subr.mxu0 0.0
  %198 = vmatpush1.msra.mxu0 0.0
  %199 = vmatprep.subr.mxu0 0.0
  %200 = vmatpush1.msra.mxu0 0.0
  %201 = vmatprep.subr.mxu0 0.0
  %202 = vmatpush1.msra.mxu0 0.0
  %203 = vmatprep.subr.mxu0 0.0
  %204 = vmatpush1.msra.mxu0 0.0
  %205 = vmatprep.subr.mxu0 0.0
  %206 = vmatpush1.msra.mxu0 0.0
  %207 = vmatprep.subr.mxu0 0.0
  %208 = vmatpush1.msra.mxu0 0.0
  %209 = vmatprep.subr.mxu0 0.0
  %210 = vmatpush1.msra.mxu0 0.0
  %211 = vmatprep.subr.mxu0 0.0
  %212 = vmatpush1.msra.mxu0 0.0
  %213 = vmatprep.subr.mxu0 0.0
  %214 = vmatpush1.msra.mxu0 0.0
  %215 = vmatprep.subr.mxu0 0.0
  %216 = vmatpush1.msra.mxu0 0.0
  %217 = vmatprep.subr.mxu0 0.0
  %218 = vmatpush1.msra.mxu0 0.0
  %219 = vmatprep.subr.mxu0 0.0
  %220 = vmatpush1.msra.mxu0 0.0
  %221 = vmatprep.subr.mxu0 0.0
  %222 = vmatpush1.msra.mxu0 0.0
  %223 = vmatprep.subr.mxu0 0.0
  %224 = vmatpush1.msra.mxu0 0.0
  %225 = vmatprep.subr.mxu0 0.0
  %226 = vmatpush1.msra.mxu0 0.0
  %227 = vmatprep.subr.mxu0 0.0
  %228 = vmatpush1.msra.mxu0 0.0
  %229 = vmatprep.subr.mxu0 0.0
  %230 = vmatpush1.msra.mxu0 0.0
  %231 = vmatprep.subr.mxu0 0.0
  %232 = vmatpush1.msra.mxu0 0.0
  %233 = vmatprep.subr.mxu0 0.0
  %234 = vmatpush1.msra.mxu0 0.0
  %235 = vmatprep.subr.mxu0 0.0
  %236 = vmatpush1.msra.mxu0 0.0
  %237 = vmatprep.subr.mxu0 0.0
  %238 = vmatpush1.msra.mxu0 0.0
  %239 = vmatprep.subr.mxu0 0.0
  %240 = vmatpush1.msra.mxu0 0.0
  %241 = vmatprep.subr.mxu0 0.0
  %242 = vmatpush1.msra.mxu0 0.0
  %243 = vmatprep.subr.mxu0 0.0
  %244 = vmatpush1.msra.mxu0 0.0
  %245 = vmatprep.mubr.f32.mxu0 0.0
  %246 = vmatmul.mubr.f32.gmra.mrb[0].mxu0 %v176
  %v247 = vpop.f32.mrb[0].mxu0
  %v248 = vadd.f32 %v174, %v247
  %v249 = vpop.f32.mrb[0].mxu0
  %250 = vmatprep.mubr.f32.mxu0 0.0
  %251 = vmatmul.mubr.f32.gmra.mrb[0].mxu0 %v179
  %v252 = vpop.f32.mrb[0].mxu0
  %v253 = vadd.f32 %v174, %v252
  %v254 = vpop.f32.mrb[0].mxu0
  %255 = vdwg.mxu0
  %v257 = vsel %vm43, %v248, 0
  %v260 = vsel %vm43, %v253, 0
  %262 = vmatprep.subr.mxu0 0.0
  %263 = vmatpush1.xpose.msra.mxu0 %v257
  %264 = vmatprep.subr.mxu0 0.0
  %265 = vmatpush1.xpose.msra.mxu0 %v260
  %266 = vmatprep.subr.mxu0 0.0
  %267 = vmatpush1.xpose.msra.mxu0 0.0
  %268 = vmatprep.subr.mxu0 0.0
  %269 = vmatpush1.xpose.msra.mxu0 0.0
  %270 = vmatprep.subr.mxu0 0.0
  %271 = vmatpush1.xpose.msra.mxu0 0.0
  %272 = vmatprep.subr.mxu0 0.0
  %273 = vmatpush1.xpose.msra.mxu0 0.0
  %274 = vmatprep.subr.mxu0 0.0
  %275 = vmatpush1.xpose.msra.mxu0 0.0
  %276 = vmatprep.subr.mxu0 0.0
  %277 = vmatpush1.xpose.msra.mxu0 0.0
  %278 = vmatprep.subr.mxu0 0.0
  %279 = vmatpush1.xpose.msra.mxu0 0.0
  %280 = vmatprep.subr.mxu0 0.0
  %281 = vmatpush1.xpose.msra.mxu0 0.0
  %282 = vmatprep.subr.mxu0 0.0
  %283 = vmatpush1.xpose.msra.mxu0 0.0
  %284 = vmatprep.subr.mxu0 0.0
  %285 = vmatpush1.xpose.msra.mxu0 0.0
  %286 = vmatprep.subr.mxu0 0.0
  %287 = vmatpush1.xpose.msra.mxu0 0.0
  %288 = vmatprep.subr.mxu0 0.0
  %289 = vmatpush1.xpose.msra.mxu0 0.0
  %290 = vmatprep.subr.mxu0 0.0
  %291 = vmatpush1.xpose.msra.mxu0 0.0
  %292 = vmatprep.subr.mxu0 0.0
  %293 = vmatpush1.xpose.msra.mxu0 0.0
  %294 = vmatprep.subr.mxu0 0.0
  %295 = vmatpush1.xpose.msra.mxu0 0.0
  %296 = vmatprep.subr.mxu0 0.0
  %297 = vmatpush1.xpose.msra.mxu0 0.0
  %298 = vmatprep.subr.mxu0 0.0
  %299 = vmatpush1.xpose.msra.mxu0 0.0
  %300 = vmatprep.subr.mxu0 0.0
  %301 = vmatpush1.xpose.msra.mxu0 0.0
  %302 = vmatprep.subr.mxu0 0.0
  %303 = vmatpush1.xpose.msra.mxu0 0.0
  %304 = vmatprep.subr.mxu0 0.0
  %305 = vmatpush1.xpose.msra.mxu0 0.0
  %306 = vmatprep.subr.mxu0 0.0
  %307 = vmatpush1.xpose.msra.mxu0 0.0
  %308 = vmatprep.subr.mxu0 0.0
  %309 = vmatpush1.xpose.msra.mxu0 0.0
  %310 = vmatprep.subr.mxu0 0.0
  %311 = vmatpush1.xpose.msra.mxu0 0.0
  %312 = vmatprep.subr.mxu0 0.0
  %313 = vmatpush1.xpose.msra.mxu0 0.0
  %314 = vmatprep.subr.mxu0 0.0
  %315 = vmatpush1.xpose.msra.mxu0 0.0
  %316 = vmatprep.subr.mxu0 0.0
  %317 = vmatpush1.xpose.msra.mxu0 0.0
  %318 = vmatprep.subr.mxu0 0.0
  %319 = vmatpush1.xpose.msra.mxu0 0.0
  %320 = vmatprep.subr.mxu0 0.0
  %321 = vmatpush1.xpose.msra.mxu0 0.0
  %322 = vmatprep.subr.mxu0 0.0
  %323 = vmatpush1.xpose.msra.mxu0 0.0
  %324 = vmatprep.subr.mxu0 0.0
  %325 = vmatpush1.xpose.msra.mxu0 0.0
  %326 = vmatprep.mubr.f32.mxu0 0.0
  %327 = vmatmul.mubr.f32.gmra.mrb[0].mxu0 %v257
  %v328 = vpop.f32.mrb[0].mxu0
  %v329 = vadd.f32 0.0, %v328
  %v330 = vpop.f32.mrb[0].mxu0
  %331 = vmatprep.mubr.f32.mxu0 0.0
  %332 = vmatmul.mubr.f32.gmra.mrb[0].mxu0 %v260
  %v333 = vpop.f32.mrb[0].mxu0
  %v334 = vadd.f32 0.0, %v333
  %v335 = vpop.f32.mrb[0].mxu0
  %336 = vdwg.mxu0
  %vm337 = vcmp.gt.f32.partialorder %v329, 0.0
  %vm338 = vcmp.gt.f32.partialorder %v334, 0.0
  %v339 = vmul.f32 %v329, 0.1
  %v340 = vmul.f32 %v334, 0.1
  %v341 = vsel %vm337, %v329, %v339
  %v342 = vsel %vm338, %v334, %v340
  %v343 = vmul.f32 %v341, %v16
  %v344 = vmul.f32 %v342, %v17
  %v345 = vadd.f32 %v343, %v19
  %v346 = vadd.f32 %v344, %v20
  %v347 = vsel %vm43, %v345, -inf
  %348 = vmax.xlane.f32.xlu0 %v347
  %v349 = vpop.xlane.xlu0 %348
  %v350 = vsel %vm43, %v346, -inf
  %351 = vmax.xlane.f32.xlu0 %v350
  %v352 = vpop.xlane.xlu0 %351
  %v353 = vsub.f32 %v345, %v349
  %v354 = vsub.f32 %v346, %v352
  %v355 = vmul.f32 %v353, 1.442695
  %v356 = vpow.pop %v355
  %v357 = vmul.f32 %v354, 1.442695
  %v358 = vpow.pop %v357
  %v359 = vsel %vm43, %v356, 0.0
  %360 = vadd.xlane.f32.xlu0 %v359
  %v361 = vpop.xlane.xlu0 %360
  %v362 = vsel %vm43, %v358, 0.0
  %363 = vadd.xlane.f32.xlu0 %v362
  %v364 = vpop.xlane.xlu0 %363
  %v365 = vrcp.pop %v361
  %v366 = vmul.f32 %v356, %v365
  %v367 = vrcp.pop %v364
  %v368 = vmul.f32 %v358, %v367
  %v370 = vsel %vm43, %v366, 0
  %v373 = vsel %vm43, %v368, 0
  %375 = vmatprep.subr.mxu0 0.0
  %376 = vmatpush1.msra.mxu0 %v248
  %377 = vmatprep.subr.mxu0 0.0
  %378 = vmatpush1.msra.mxu0 %v253
  %379 = vmatprep.subr.mxu0 0.0
  %380 = vmatpush1.msra.mxu0 0.0
  %381 = vmatprep.subr.mxu0 0.0
  %382 = vmatpush1.msra.mxu0 0.0
  %383 = vmatprep.subr.mxu0 0.0
  %384 = vmatpush1.msra.mxu0 0.0
  %385 = vmatprep.subr.mxu0 0.0
  %386 = vmatpush1.msra.mxu0 0.0
  %387 = vmatprep.subr.mxu0 0.0
  %388 = vmatpush1.msra.mxu0 0.0
  %389 = vmatprep.subr.mxu0 0.0
  %390 = vmatpush1.msra.mxu0 0.0
  %391 = vmatprep.subr.mxu0 0.0
  %392 = vmatpush1.msra.mxu0 0.0
  %393 = vmatprep.subr.mxu0 0.0
  %394 = vmatpush1.msra.mxu0 0.0
  %395 = vmatprep.subr.mxu0 0.0
  %396 = vmatpush1.msra.mxu0 0.0
  %397 = vmatprep.subr.mxu0 0.0
  %398 = vmatpush1.msra.mxu0 0.0
  %399 = vmatprep.subr.mxu0 0.0
  %400 = vmatpush1.msra.mxu0 0.0
  %401 = vmatprep.subr.mxu0 0.0
  %402 = vmatpush1.msra.mxu0 0.0
  %403 = vmatprep.subr.mxu0 0.0
  %404 = vmatpush1.msra.mxu0 0.0
  %405 = vmatprep.subr.mxu0 0.0
  %406 = vmatpush1.msra.mxu0 0.0
  %407 = vmatprep.subr.mxu0 0.0
  %408 = vmatpush1.msra.mxu0 0.0
  %409 = vmatprep.subr.mxu0 0.0
  %410 = vmatpush1.msra.mxu0 0.0
  %411 = vmatprep.subr.mxu0 0.0
  %412 = vmatpush1.msra.mxu0 0.0
  %413 = vmatprep.subr.mxu0 0.0
  %414 = vmatpush1.msra.mxu0 0.0
  %415 = vmatprep.subr.mxu0 0.0
  %416 = vmatpush1.msra.mxu0 0.0
  %417 = vmatprep.subr.mxu0 0.0
  %418 = vmatpush1.msra.mxu0 0.0
  %419 = vmatprep.subr.mxu0 0.0
  %420 = vmatpush1.msra.mxu0 0.0
  %421 = vmatprep.subr.mxu0 0.0
  %422 = vmatpush1.msra.mxu0 0.0
  %423 = vmatprep.subr.mxu0 0.0
  %424 = vmatpush1.msra.mxu0 0.0
  %425 = vmatprep.subr.mxu0 0.0
  %426 = vmatpush1.msra.mxu0 0.0
  %427 = vmatprep.subr.mxu0 0.0
  %428 = vmatpush1.msra.mxu0 0.0
  %429 = vmatprep.subr.mxu0 0.0
  %430 = vmatpush1.msra.mxu0 0.0
  %431 = vmatprep.subr.mxu0 0.0
  %432 = vmatpush1.msra.mxu0 0.0
  %433 = vmatprep.subr.mxu0 0.0
  %434 = vmatpush1.msra.mxu0 0.0
  %435 = vmatprep.subr.mxu0 0.0
  %436 = vmatpush1.msra.mxu0 0.0
  %437 = vmatprep.subr.mxu0 0.0
  %438 = vmatpush1.msra.mxu0 0.0
  %439 = vmatprep.mubr.f32.mxu0 0.0
  %440 = vmatmul.mubr.f32.gmra.mrb[0].mxu0 %v370
  %v441 = vpop.f32.mrb[0].mxu0
  %v442 = vadd.f32 0.0, %v441
  %v443 = vpop.f32.mrb[0].mxu0
  %444 = vmatprep.mubr.f32.mxu0 0.0
  %445 = vmatmul.mubr.f32.gmra.mrb[0].mxu0 %v373
  %v446 = vpop.f32.mrb[0].mxu0
  %v447 = vadd.f32 0.0, %v446
  %v448 = vpop.f32.mrb[0].mxu0
  %449 = vdwg.mxu0
  %vm450 = vcmp.gt.f32.partialorder %v442, 0.0
  %vm451 = vcmp.gt.f32.partialorder %v447, 0.0
  %v452 = vmul.f32 %v442, 1.442695
  %v453 = vpow.pop %v452
  %v454 = vmul.f32 %v447, 1.442695
  %v455 = vpow.pop %v454
  %v456 = vsub.f32 %v453, 1.0
  %v457 = vsub.f32 %v455, 1.0
  %v458 = vsel %vm450, %v442, %v456
  %v459 = vsel %vm451, %v447, %v457
  %462 = vrot.lane.b32.xlu0 %v117, 96
  %v463 = vpop.permute.xlu0 %462
  %464 = vrot.lane.b32.xlu0 %v122, 96
  %v465 = vpop.permute.xlu0 %464
  %v468 = vsel %vm125, %v463, 0.0
  %469 = vadd.xlane.f32.xlu0 %v468
  %v470 = vpop.xlane.xlu0 %469
  %v471 = vsel %vm125, %v465, 0.0
  %472 = vadd.xlane.f32.xlu0 %v471
  %v473 = vpop.xlane.xlu0 %472
  %v474 = vmul.f32 %v470, %v132
  %v475 = vmul.f32 %v473, %v132
  %v476 = vsub.f32 %v117, %v474
  %v477 = vsub.f32 %v122, %v475
  %v478 = vmul.f32 %v476, %v476
  %v479 = vmul.f32 %v477, %v477
  %482 = vrot.lane.b32.xlu0 %v478, 96
  %v483 = vpop.permute.xlu0 %482
  %484 = vrot.lane.b32.xlu0 %v479, 96
  %v485 = vpop.permute.xlu0 %484
  %v488 = vsel %vm125, %v483, 0.0
  %489 = vadd.xlane.f32.xlu0 %v488
  %v490 = vpop.xlane.xlu0 %489
  %v491 = vsel %vm125, %v485, 0.0
  %492 = vadd.xlane.f32.xlu0 %v491
  %v493 = vpop.xlane.xlu0 %492
  %v494 = vmul.f32 %v490, %v132
  %v495 = vmul.f32 %v493, %v132
  %v496 = vadd.f32 %v494, 1e-05
  %v497 = vadd.f32 %v495, 1e-05
  %v498 = vrsqrt.pop %v496
  %v499 = vrsqrt.pop %v497
  %v500 = vmul.f32 %v476, %v498
  %v501 = vmul.f32 %v477, %v499
  %v502 = vmul.f32 %v500, %v156
  %v503 = vmul.f32 %v501, %v156
  %v504 = vadd.f32 %v502, %v162
  %v505 = vadd.f32 %v503, %v162
  %v506 = vmax.f32 %v504, 0.0
  %v507 = vmax.f32 %v505, 0.0
  %v508 = vld [vmem:[%s2 + $0x38] sm:$0xff]
  %v509 = vld [vmem:[%s2 + $0x40] sm:$0xff]
  %v510 = vld [vmem:[%s2 + $0x48] sm:$0xff]
  %v511 = vld [vmem:[%s2 + $0x50] sm:$0xff]
  %514 = vrot.lane.b32.xlu0 %v506, 96
  %v515 = vpop.permute.xlu0 %514
  %516 = vrot.lane.b32.xlu0 %v507, 96
  %v517 = vpop.permute.xlu0 %516
  %519 = vrot.lane.b32.xlu0 %v174, 112
  %v520 = vpop.permute.xlu0 %519
  %v522 = vsel %vm125, %v515, 0
  %v524 = vsel %vm125, %v517, 0
  %526 = vmatprep.subr.mxu0 0.0
  %527 = vmatpush1.msra.mxu0 %v508
  %528 = vmatprep.subr.mxu0 0.0
  %529 = vmatpush1.msra.mxu0 %v509
  %530 = vmatprep.subr.mxu0 0.0
  %531 = vmatpush1.msra.mxu0 %v510
  %532 = vmatprep.subr.mxu0 0.0
  %533 = vmatpush1.msra.mxu0 %v511
  %534 = vmatprep.subr.mxu0 0.0
  %535 = vmatpush1.msra.mxu0 0.0
  %536 = vmatprep.subr.mxu0 0.0
  %537 = vmatpush1.msra.mxu0 0.0
  %538 = vmatprep.subr.mxu0 0.0
  %539 = vmatpush1.msra.mxu0 0.0
  %540 = vmatprep.subr.mxu0 0.0
  %541 = vmatpush1.msra.mxu0 0.0
  %542 = vmatprep.subr.mxu0 0.0
  %543 = vmatpush1.msra.mxu0 0.0
  %544 = vmatprep.subr.mxu0 0.0
  %545 = vmatpush1.msra.mxu0 0.0
  %546 = vmatprep.subr.mxu0 0.0
  %547 = vmatpush1.msra.mxu0 0.0
  %548 = vmatprep.subr.mxu0 0.0
  %549 = vmatpush1.msra.mxu0 0.0
  %550 = vmatprep.subr.mxu0 0.0
  %551 = vmatpush1.msra.mxu0 0.0
  %552 = vmatprep.subr.mxu0 0.0
  %553 = vmatpush1.msra.mxu0 0.0
  %554 = vmatprep.subr.mxu0 0.0
  %555 = vmatpush1.msra.mxu0 0.0
  %556 = vmatprep.subr.mxu0 0.0
  %557 = vmatpush1.msra.mxu0 0.0
  %558 = vmatprep.subr.mxu0 0.0
  %559 = vmatpush1.msra.mxu0 0.0
  %560 = vmatprep.subr.mxu0 0.0
  %561 = vmatpush1.msra.mxu0 0.0
  %562 = vmatprep.subr.mxu0 0.0
  %563 = vmatpush1.msra.mxu0 0.0
  %564 = vmatprep.subr.mxu0 0.0
  %565 = vmatpush1.msra.mxu0 0.0
  %566 = vmatprep.subr.mxu0 0.0
  %567 = vmatpush1.msra.mxu0 0.0
  %568 = vmatprep.subr.mxu0 0.0
  %569 = vmatpush1.msra.mxu0 0.0
  %570 = vmatprep.subr.mxu0 0.0
  %571 = vmatpush1.msra.mxu0 0.0
  %572 = vmatprep.subr.mxu0 0.0
  %573 = vmatpush1.msra.mxu0 0.0
  %574 = vmatprep.subr.mxu0 0.0
  %575 = vmatpush1.msra.mxu0 0.0
  %576 = vmatprep.subr.mxu0 0.0
  %577 = vmatpush1.msra.mxu0 0.0
  %578 = vmatprep.subr.mxu0 0.0
  %579 = vmatpush1.msra.mxu0 0.0
  %580 = vmatprep.subr.mxu0 0.0
  %581 = vmatpush1.msra.mxu0 0.0
  %582 = vmatprep.subr.mxu0 0.0
  %583 = vmatpush1.msra.mxu0 0.0
  %584 = vmatprep.subr.mxu0 0.0
  %585 = vmatpush1.msra.mxu0 0.0
  %586 = vmatprep.subr.mxu0 0.0
  %587 = vmatpush1.msra.mxu0 0.0
  %588 = vmatprep.subr.mxu0 0.0
  %589 = vmatpush1.msra.mxu0 0.0
  %590 = vmatprep.mubr.f32.mxu0 0.0
  %591 = vmatmul.mubr.f32.gmra.mrb[0].mxu0 %v522
  %v592 = vpop.f32.mrb[0].mxu0
  %v593 = vadd.f32 %v520, %v592
  %v594 = vpop.f32.mrb[0].mxu0
  %595 = vmatprep.mubr.f32.mxu0 0.0
  %596 = vmatmul.mubr.f32.gmra.mrb[0].mxu0 %v524
  %v597 = vpop.f32.mrb[0].mxu0
  %v598 = vadd.f32 %v520, %v597
  %v599 = vpop.f32.mrb[0].mxu0
  %600 = vdwg.mxu0
  %v602 = vsel %vm43, %v593, 0
  %v605 = vsel %vm43, %v598, 0
  %607 = vmatprep.subr.mxu0 0.0
  %608 = vmatpush1.xpose.msra.mxu0 %v602
  %609 = vmatprep.subr.mxu0 0.0
  %610 = vmatpush1.xpose.msra.mxu0 %v605
  %611 = vmatprep.subr.mxu0 0.0
  %612 = vmatpush1.xpose.msra.mxu0 0.0
  %613 = vmatprep.subr.mxu0 0.0
  %614 = vmatpush1.xpose.msra.mxu0 0.0
  %615 = vmatprep.subr.mxu0 0.0
  %616 = vmatpush1.xpose.msra.mxu0 0.0
  %617 = vmatprep.subr.mxu0 0.0
  %618 = vmatpush1.xpose.msra.mxu0 0.0
  %619 = vmatprep.subr.mxu0 0.0
  %620 = vmatpush1.xpose.msra.mxu0 0.0
  %621 = vmatprep.subr.mxu0 0.0
  %622 = vmatpush1.xpose.msra.mxu0 0.0
  %623 = vmatprep.subr.mxu0 0.0
  %624 = vmatpush1.xpose.msra.mxu0 0.0
  %625 = vmatprep.subr.mxu0 0.0
  %626 = vmatpush1.xpose.msra.mxu0 0.0
  %627 = vmatprep.subr.mxu0 0.0
  %628 = vmatpush1.xpose.msra.mxu0 0.0
  %629 = vmatprep.subr.mxu0 0.0
  %630 = vmatpush1.xpose.msra.mxu0 0.0
  %631 = vmatprep.subr.mxu0 0.0
  %632 = vmatpush1.xpose.msra.mxu0 0.0
  %633 = vmatprep.subr.mxu0 0.0
  %634 = vmatpush1.xpose.msra.mxu0 0.0
  %635 = vmatprep.subr.mxu0 0.0
  %636 = vmatpush1.xpose.msra.mxu0 0.0
  %637 = vmatprep.subr.mxu0 0.0
  %638 = vmatpush1.xpose.msra.mxu0 0.0
  %639 = vmatprep.subr.mxu0 0.0
  %640 = vmatpush1.xpose.msra.mxu0 0.0
  %641 = vmatprep.subr.mxu0 0.0
  %642 = vmatpush1.xpose.msra.mxu0 0.0
  %643 = vmatprep.subr.mxu0 0.0
  %644 = vmatpush1.xpose.msra.mxu0 0.0
  %645 = vmatprep.subr.mxu0 0.0
  %646 = vmatpush1.xpose.msra.mxu0 0.0
  %647 = vmatprep.subr.mxu0 0.0
  %648 = vmatpush1.xpose.msra.mxu0 0.0
  %649 = vmatprep.subr.mxu0 0.0
  %650 = vmatpush1.xpose.msra.mxu0 0.0
  %651 = vmatprep.subr.mxu0 0.0
  %652 = vmatpush1.xpose.msra.mxu0 0.0
  %653 = vmatprep.subr.mxu0 0.0
  %654 = vmatpush1.xpose.msra.mxu0 0.0
  %655 = vmatprep.subr.mxu0 0.0
  %656 = vmatpush1.xpose.msra.mxu0 0.0
  %657 = vmatprep.subr.mxu0 0.0
  %658 = vmatpush1.xpose.msra.mxu0 0.0
  %659 = vmatprep.subr.mxu0 0.0
  %660 = vmatpush1.xpose.msra.mxu0 0.0
  %661 = vmatprep.subr.mxu0 0.0
  %662 = vmatpush1.xpose.msra.mxu0 0.0
  %663 = vmatprep.subr.mxu0 0.0
  %664 = vmatpush1.xpose.msra.mxu0 0.0
  %665 = vmatprep.subr.mxu0 0.0
  %666 = vmatpush1.xpose.msra.mxu0 0.0
  %667 = vmatprep.subr.mxu0 0.0
  %668 = vmatpush1.xpose.msra.mxu0 0.0
  %669 = vmatprep.subr.mxu0 0.0
  %670 = vmatpush1.xpose.msra.mxu0 0.0
  %671 = vmatprep.mubr.f32.mxu0 0.0
  %672 = vmatmul.mubr.f32.gmra.mrb[0].mxu0 %v602
  %v673 = vpop.f32.mrb[0].mxu0
  %v674 = vadd.f32 0.0, %v673
  %v675 = vpop.f32.mrb[0].mxu0
  %676 = vmatprep.mubr.f32.mxu0 0.0
  %677 = vmatmul.mubr.f32.gmra.mrb[0].mxu0 %v605
  %v678 = vpop.f32.mrb[0].mxu0
  %v679 = vadd.f32 0.0, %v678
  %v680 = vpop.f32.mrb[0].mxu0
  %681 = vdwg.mxu0
  %vm682 = vcmp.gt.f32.partialorder %v674, 0.0
  %vm683 = vcmp.gt.f32.partialorder %v679, 0.0
  %v684 = vmul.f32 %v674, 0.1
  %v685 = vmul.f32 %v679, 0.1
  %v686 = vsel %vm682, %v674, %v684
  %v687 = vsel %vm683, %v679, %v685
  %v688 = vmul.f32 %v686, %v16
  %v689 = vmul.f32 %v687, %v17
  %v690 = vadd.f32 %v688, %v19
  %v691 = vadd.f32 %v689, %v20
  %v692 = vsel %vm43, %v690, -inf
  %693 = vmax.xlane.f32.xlu0 %v692
  %v694 = vpop.xlane.xlu0 %693
  %v695 = vsel %vm43, %v691, -inf
  %696 = vmax.xlane.f32.xlu0 %v695
  %v697 = vpop.xlane.xlu0 %696
  %v698 = vsub.f32 %v690, %v694
  %v699 = vsub.f32 %v691, %v697
  %v700 = vmul.f32 %v698, 1.442695
  %v701 = vpow.pop %v700
  %v702 = vmul.f32 %v699, 1.442695
  %v703 = vpow.pop %v702
  %v704 = vsel %vm43, %v701, 0.0
  %705 = vadd.xlane.f32.xlu0 %v704
  %v706 = vpop.xlane.xlu0 %705
  %v707 = vsel %vm43, %v703, 0.0
  %708 = vadd.xlane.f32.xlu0 %v707
  %v709 = vpop.xlane.xlu0 %708
  %v710 = vrcp.pop %v706
  %v711 = vmul.f32 %v701, %v710
  %v712 = vrcp.pop %v709
  %v713 = vmul.f32 %v703, %v712
  %v715 = vsel %vm43, %v711, 0
  %v718 = vsel %vm43, %v713, 0
  %720 = vmatprep.subr.mxu0 0.0
  %721 = vmatpush1.msra.mxu0 %v593
  %722 = vmatprep.subr.mxu0 0.0
  %723 = vmatpush1.msra.mxu0 %v598
  %724 = vmatprep.subr.mxu0 0.0
  %725 = vmatpush1.msra.mxu0 0.0
  %726 = vmatprep.subr.mxu0 0.0
  %727 = vmatpush1.msra.mxu0 0.0
  %728 = vmatprep.subr.mxu0 0.0
  %729 = vmatpush1.msra.mxu0 0.0
  %730 = vmatprep.subr.mxu0 0.0
  %731 = vmatpush1.msra.mxu0 0.0
  %732 = vmatprep.subr.mxu0 0.0
  %733 = vmatpush1.msra.mxu0 0.0
  %734 = vmatprep.subr.mxu0 0.0
  %735 = vmatpush1.msra.mxu0 0.0
  %736 = vmatprep.subr.mxu0 0.0
  %737 = vmatpush1.msra.mxu0 0.0
  %738 = vmatprep.subr.mxu0 0.0
  %739 = vmatpush1.msra.mxu0 0.0
  %740 = vmatprep.subr.mxu0 0.0
  %741 = vmatpush1.msra.mxu0 0.0
  %742 = vmatprep.subr.mxu0 0.0
  %743 = vmatpush1.msra.mxu0 0.0
  %744 = vmatprep.subr.mxu0 0.0
  %745 = vmatpush1.msra.mxu0 0.0
  %746 = vmatprep.subr.mxu0 0.0
  %747 = vmatpush1.msra.mxu0 0.0
  %748 = vmatprep.subr.mxu0 0.0
  %749 = vmatpush1.msra.mxu0 0.0
  %750 = vmatprep.subr.mxu0 0.0
  %751 = vmatpush1.msra.mxu0 0.0
  %752 = vmatprep.subr.mxu0 0.0
  %753 = vmatpush1.msra.mxu0 0.0
  %754 = vmatprep.subr.mxu0 0.0
  %755 = vmatpush1.msra.mxu0 0.0
  %756 = vmatprep.subr.mxu0 0.0
  %757 = vmatpush1.msra.mxu0 0.0
  %758 = vmatprep.subr.mxu0 0.0
  %759 = vmatpush1.msra.mxu0 0.0
  %760 = vmatprep.subr.mxu0 0.0
  %761 = vmatpush1.msra.mxu0 0.0
  %762 = vmatprep.subr.mxu0 0.0
  %763 = vmatpush1.msra.mxu0 0.0
  %764 = vmatprep.subr.mxu0 0.0
  %765 = vmatpush1.msra.mxu0 0.0
  %766 = vmatprep.subr.mxu0 0.0
  %767 = vmatpush1.msra.mxu0 0.0
  %768 = vmatprep.subr.mxu0 0.0
  %769 = vmatpush1.msra.mxu0 0.0
  %770 = vmatprep.subr.mxu0 0.0
  %771 = vmatpush1.msra.mxu0 0.0
  %772 = vmatprep.subr.mxu0 0.0
  %773 = vmatpush1.msra.mxu0 0.0
  %774 = vmatprep.subr.mxu0 0.0
  %775 = vmatpush1.msra.mxu0 0.0
  %776 = vmatprep.subr.mxu0 0.0
  %777 = vmatpush1.msra.mxu0 0.0
  %778 = vmatprep.subr.mxu0 0.0
  %779 = vmatpush1.msra.mxu0 0.0
  %780 = vmatprep.subr.mxu0 0.0
  %781 = vmatpush1.msra.mxu0 0.0
  %782 = vmatprep.subr.mxu0 0.0
  %783 = vmatpush1.msra.mxu0 0.0
  %784 = vmatprep.mubr.f32.mxu0 0.0
  %785 = vmatmul.mubr.f32.gmra.mrb[0].mxu0 %v715
  %v786 = vpop.f32.mrb[0].mxu0
  %v787 = vadd.f32 0.0, %v786
  %v788 = vpop.f32.mrb[0].mxu0
  %789 = vmatprep.mubr.f32.mxu0 0.0
  %790 = vmatmul.mubr.f32.gmra.mrb[0].mxu0 %v718
  %v791 = vpop.f32.mrb[0].mxu0
  %v792 = vadd.f32 0.0, %v791
  %v793 = vpop.f32.mrb[0].mxu0
  %794 = vdwg.mxu0
  %vm795 = vcmp.gt.f32.partialorder %v787, 0.0
  %vm796 = vcmp.gt.f32.partialorder %v792, 0.0
  %v797 = vmul.f32 %v787, 1.442695
  %v798 = vpow.pop %v797
  %v799 = vmul.f32 %v792, 1.442695
  %v800 = vpow.pop %v799
  %v801 = vsub.f32 %v798, 1.0
  %v802 = vsub.f32 %v800, 1.0
  %v803 = vsel %vm795, %v787, %v801
  %v804 = vsel %vm796, %v792, %v802
  %v806 = vsel %vm43, %v803, 0
  %v809 = vsel %vm43, %v804, 0
  %811 = vmatprep.subr.mxu0 0.0
  %812 = vmatpush1.msra.mxu0 %v33
  %813 = vmatprep.subr.mxu0 0.0
  %814 = vmatpush1.msra.mxu0 %v34
  %815 = vmatprep.subr.mxu0 0.0
  %816 = vmatpush1.msra.mxu0 0.0
  %817 = vmatprep.subr.mxu0 0.0
  %818 = vmatpush1.msra.mxu0 0.0
  %819 = vmatprep.subr.mxu0 0.0
  %820 = vmatpush1.msra.mxu0 0.0
  %821 = vmatprep.subr.mxu0 0.0
  %822 = vmatpush1.msra.mxu0 0.0
  %823 = vmatprep.subr.mxu0 0.0
  %824 = vmatpush1.msra.mxu0 0.0
  %825 = vmatprep.subr.mxu0 0.0
  %826 = vmatpush1.msra.mxu0 0.0
  %827 = vmatprep.subr.mxu0 0.0
  %828 = vmatpush1.msra.mxu0 0.0
  %829 = vmatprep.subr.mxu0 0.0
  %830 = vmatpush1.msra.mxu0 0.0
  %831 = vmatprep.subr.mxu0 0.0
  %832 = vmatpush1.msra.mxu0 0.0
  %833 = vmatprep.subr.mxu0 0.0
  %834 = vmatpush1.msra.mxu0 0.0
  %835 = vmatprep.subr.mxu0 0.0
  %836 = vmatpush1.msra.mxu0 0.0
  %837 = vmatprep.subr.mxu0 0.0
  %838 = vmatpush1.msra.mxu0 0.0
  %839 = vmatprep.subr.mxu0 0.0
  %840 = vmatpush1.msra.mxu0 0.0
  %841 = vmatprep.subr.mxu0 0.0
  %842 = vmatpush1.msra.mxu0 0.0
  %843 = vmatprep.subr.mxu0 0.0
  %844 = vmatpush1.msra.mxu0 0.0
  %845 = vmatprep.subr.mxu0 0.0
  %846 = vmatpush1.msra.mxu0 0.0
  %847 = vmatprep.subr.mxu0 0.0
  %848 = vmatpush1.msra.mxu0 0.0
  %849 = vmatprep.subr.mxu0 0.0
  %850 = vmatpush1.msra.mxu0 0.0
  %851 = vmatprep.subr.mxu0 0.0
  %852 = vmatpush1.msra.mxu0 0.0
  %853 = vmatprep.subr.mxu0 0.0
  %854 = vmatpush1.msra.mxu0 0.0
  %855 = vmatprep.subr.mxu0 0.0
  %856 = vmatpush1.msra.mxu0 0.0
  %857 = vmatprep.subr.mxu0 0.0
  %858 = vmatpush1.msra.mxu0 0.0
  %859 = vmatprep.subr.mxu0 0.0
  %860 = vmatpush1.msra.mxu0 0.0
  %861 = vmatprep.subr.mxu0 0.0
  %862 = vmatpush1.msra.mxu0 0.0
  %863 = vmatprep.subr.mxu0 0.0
  %864 = vmatpush1.msra.mxu0 0.0
  %865 = vmatprep.subr.mxu0 0.0
  %866 = vmatpush1.msra.mxu0 0.0
  %867 = vmatprep.subr.mxu0 0.0
  %868 = vmatpush1.msra.mxu0 0.0
  %869 = vmatprep.subr.mxu0 0.0
  %870 = vmatpush1.msra.mxu0 0.0
  %871 = vmatprep.subr.mxu0 0.0
  %872 = vmatpush1.msra.mxu0 0.0
  %873 = vmatprep.subr.mxu0 0.0
  %874 = vmatpush1.msra.mxu0 0.0
  %875 = vmatprep.mubr.f32.mxu0 0.0
  %876 = vmatmul.mubr.f32.gmra.mrb[0].mxu0 %v806
  %v877 = vpop.f32.mrb[0].mxu0
  %v878 = vadd.f32 0.0, %v877
  %v879 = vpop.f32.mrb[0].mxu0
  %880 = vmatprep.mubr.f32.mxu0 0.0
  %881 = vmatmul.mubr.f32.gmra.mrb[0].mxu0 %v809
  %v882 = vpop.f32.mrb[0].mxu0
  %v883 = vadd.f32 0.0, %v882
  %v884 = vpop.f32.mrb[0].mxu0
  %885 = vdwg.mxu0
  %v887 = vsel %vm43, %v458, 0
  %v890 = vsel %vm43, %v459, 0
  %892 = vmatprep.subr.mxu0 0.0
  %893 = vmatpush1.msra.mxu0 %v31
  %894 = vmatprep.subr.mxu0 0.0
  %895 = vmatpush1.msra.mxu0 %v32
  %896 = vmatprep.subr.mxu0 0.0
  %897 = vmatpush1.msra.mxu0 0.0
  %898 = vmatprep.subr.mxu0 0.0
  %899 = vmatpush1.msra.mxu0 0.0
  %900 = vmatprep.subr.mxu0 0.0
  %901 = vmatpush1.msra.mxu0 0.0
  %902 = vmatprep.subr.mxu0 0.0
  %903 = vmatpush1.msra.mxu0 0.0
  %904 = vmatprep.subr.mxu0 0.0
  %905 = vmatpush1.msra.mxu0 0.0
  %906 = vmatprep.subr.mxu0 0.0
  %907 = vmatpush1.msra.mxu0 0.0
  %908 = vmatprep.subr.mxu0 0.0
  %909 = vmatpush1.msra.mxu0 0.0
  %910 = vmatprep.subr.mxu0 0.0
  %911 = vmatpush1.msra.mxu0 0.0
  %912 = vmatprep.subr.mxu0 0.0
  %913 = vmatpush1.msra.mxu0 0.0
  %914 = vmatprep.subr.mxu0 0.0
  %915 = vmatpush1.msra.mxu0 0.0
  %916 = vmatprep.subr.mxu0 0.0
  %917 = vmatpush1.msra.mxu0 0.0
  %918 = vmatprep.subr.mxu0 0.0
  %919 = vmatpush1.msra.mxu0 0.0
  %920 = vmatprep.subr.mxu0 0.0
  %921 = vmatpush1.msra.mxu0 0.0
  %922 = vmatprep.subr.mxu0 0.0
  %923 = vmatpush1.msra.mxu0 0.0
  %924 = vmatprep.subr.mxu0 0.0
  %925 = vmatpush1.msra.mxu0 0.0
  %926 = vmatprep.subr.mxu0 0.0
  %927 = vmatpush1.msra.mxu0 0.0
  %928 = vmatprep.subr.mxu0 0.0
  %929 = vmatpush1.msra.mxu0 0.0
  %930 = vmatprep.subr.mxu0 0.0
  %931 = vmatpush1.msra.mxu0 0.0
  %932 = vmatprep.subr.mxu0 0.0
  %933 = vmatpush1.msra.mxu0 0.0
  %934 = vmatprep.subr.mxu0 0.0
  %935 = vmatpush1.msra.mxu0 0.0
  %936 = vmatprep.subr.mxu0 0.0
  %937 = vmatpush1.msra.mxu0 0.0
  %938 = vmatprep.subr.mxu0 0.0
  %939 = vmatpush1.msra.mxu0 0.0
  %940 = vmatprep.subr.mxu0 0.0
  %941 = vmatpush1.msra.mxu0 0.0
  %942 = vmatprep.subr.mxu0 0.0
  %943 = vmatpush1.msra.mxu0 0.0
  %944 = vmatprep.subr.mxu0 0.0
  %945 = vmatpush1.msra.mxu0 0.0
  %946 = vmatprep.subr.mxu0 0.0
  %947 = vmatpush1.msra.mxu0 0.0
  %948 = vmatprep.subr.mxu0 0.0
  %949 = vmatpush1.msra.mxu0 0.0
  %950 = vmatprep.subr.mxu0 0.0
  %951 = vmatpush1.msra.mxu0 0.0
  %952 = vmatprep.subr.mxu0 0.0
  %953 = vmatpush1.msra.mxu0 0.0
  %954 = vmatprep.subr.mxu0 0.0
  %955 = vmatpush1.msra.mxu0 0.0
  %956 = vmatprep.mubr.f32.mxu0 0.0
  %957 = vmatmul.mubr.f32.gmra.mrb[0].mxu0 %v887
  %v958 = vpop.f32.mrb[0].mxu0
  %v959 = vadd.f32 %v878, %v958
  %v960 = vpop.f32.mrb[0].mxu0
  %961 = vmatprep.mubr.f32.mxu0 0.0
  %962 = vmatmul.mubr.f32.gmra.mrb[0].mxu0 %v890
  %v963 = vpop.f32.mrb[0].mxu0
  %v964 = vadd.f32 %v883, %v963
  %v965 = vpop.f32.mrb[0].mxu0
  %966 = vdwg.mxu0
  %v967 = vlaneseq
  %v968 = vshrl.u32 %v967, 7
  %v969 = vsub.s32 0, %v968
  %v970 = vrot.slane %v27, %v969
  %v971 = vadd.f32 %v959, %v970
  %v972 = vadd.f32 %v964, %v970
  %v973 = vsel %vm125, %v971, 0.0
  %974 = vadd.xlane.f32.xlu0 %v973
  %v975 = vpop.xlane.xlu0 %974
  %v976 = vsel %vm125, %v972, 0.0
  %977 = vadd.xlane.f32.xlu0 %v976
  %v978 = vpop.xlane.xlu0 %977
  %v979 = vmul.f32 %v975, %v132
  %v980 = vmul.f32 %v978, %v132
  %v981 = vsub.f32 %v971, %v979
  %v982 = vsub.f32 %v972, %v980
  %v983 = vmul.f32 %v981, %v981
  %v984 = vmul.f32 %v982, %v982
  %v985 = vsel %vm125, %v983, 0.0
  %986 = vadd.xlane.f32.xlu0 %v985
  %v987 = vpop.xlane.xlu0 %986
  %v988 = vsel %vm125, %v984, 0.0
  %989 = vadd.xlane.f32.xlu0 %v988
  %v990 = vpop.xlane.xlu0 %989
  %v991 = vmul.f32 %v987, %v132
  %v992 = vmul.f32 %v990, %v132
  %v993 = vadd.f32 %v991, 1e-05
  %v994 = vadd.f32 %v992, 1e-05
  %v995 = vrsqrt.pop %v993
  %v996 = vrsqrt.pop %v994
  %v997 = vmul.f32 %v981, %v995
  %v998 = vmul.f32 %v982, %v996
  %v999 = vlaneseq
  %v1000 = vshrl.u32 %v999, 7
  %v1001 = vsub.s32 0, %v1000
  %v1002 = vrot.slane %v28, %v1001
  %v1003 = vmul.f32 %v997, %v1002
  %v1004 = vmul.f32 %v998, %v1002
  %v1005 = vlaneseq
  %v1006 = vshrl.u32 %v1005, 7
  %v1007 = vsub.s32 0, %v1006
  %v1008 = vrot.slane %v29, %v1007
  %v1009 = vadd.f32 %v1003, %v1008
  %v1010 = vadd.f32 %v1004, %v1008
  %v1011 = vmax.f32 %v1009, 0.0
  %v1012 = vmax.f32 %v1010, 0.0
  %v1013 = vlaneseq
  %v1014 = vshrl.u32 %v1013, 7
  %v1015 = vsub.s32 0, %v1014
  %v1016 = vrot.slane %v30, %v1015
  %v1018 = vsel %vm125, %v1011, 0
  %v1021 = vsel %vm125, %v1012, 0
  %1023 = vmatprep.subr.mxu0 0.0
  %1024 = vmatpush1.msra.mxu0 %v35
  %1025 = vmatprep.subr.mxu0 0.0
  %1026 = vmatpush1.msra.mxu0 %v36
  %1027 = vmatprep.subr.mxu0 0.0
  %1028 = vmatpush1.msra.mxu0 %v37
  %1029 = vmatprep.subr.mxu0 0.0
  %1030 = vmatpush1.msra.mxu0 %v38
  %1031 = vmatprep.subr.mxu0 0.0
  %1032 = vmatpush1.msra.mxu0 0.0
  %1033 = vmatprep.subr.mxu0 0.0
  %1034 = vmatpush1.msra.mxu0 0.0
  %1035 = vmatprep.subr.mxu0 0.0
  %1036 = vmatpush1.msra.mxu0 0.0
  %1037 = vmatprep.subr.mxu0 0.0
  %1038 = vmatpush1.msra.mxu0 0.0
  %1039 = vmatprep.subr.mxu0 0.0
  %1040 = vmatpush1.msra.mxu0 0.0
  %1041 = vmatprep.subr.mxu0 0.0
  %1042 = vmatpush1.msra.mxu0 0.0
  %1043 = vmatprep.subr.mxu0 0.0
  %1044 = vmatpush1.msra.mxu0 0.0
  %1045 = vmatprep.subr.mxu0 0.0
  %1046 = vmatpush1.msra.mxu0 0.0
  %1047 = vmatprep.subr.mxu0 0.0
  %1048 = vmatpush1.msra.mxu0 0.0
  %1049 = vmatprep.subr.mxu0 0.0
  %1050 = vmatpush1.msra.mxu0 0.0
  %1051 = vmatprep.subr.mxu0 0.0
  %1052 = vmatpush1.msra.mxu0 0.0
  %1053 = vmatprep.subr.mxu0 0.0
  %1054 = vmatpush1.msra.mxu0 0.0
  %1055 = vmatprep.subr.mxu0 0.0
  %1056 = vmatpush1.msra.mxu0 0.0
  %1057 = vmatprep.subr.mxu0 0.0
  %1058 = vmatpush1.msra.mxu0 0.0
  %1059 = vmatprep.subr.mxu0 0.0
  %1060 = vmatpush1.msra.mxu0 0.0
  %1061 = vmatprep.subr.mxu0 0.0
  %1062 = vmatpush1.msra.mxu0 0.0
  %1063 = vmatprep.subr.mxu0 0.0
  %1064 = vmatpush1.msra.mxu0 0.0
  %1065 = vmatprep.subr.mxu0 0.0
  %1066 = vmatpush1.msra.mxu0 0.0
  %1067 = vmatprep.subr.mxu0 0.0
  %1068 = vmatpush1.msra.mxu0 0.0
  %1069 = vmatprep.subr.mxu0 0.0
  %1070 = vmatpush1.msra.mxu0 0.0
  %1071 = vmatprep.subr.mxu0 0.0
  %1072 = vmatpush1.msra.mxu0 0.0
  %1073 = vmatprep.subr.mxu0 0.0
  %1074 = vmatpush1.msra.mxu0 0.0
  %1075 = vmatprep.subr.mxu0 0.0
  %1076 = vmatpush1.msra.mxu0 0.0
  %1077 = vmatprep.subr.mxu0 0.0
  %1078 = vmatpush1.msra.mxu0 0.0
  %1079 = vmatprep.subr.mxu0 0.0
  %1080 = vmatpush1.msra.mxu0 0.0
  %1081 = vmatprep.subr.mxu0 0.0
  %1082 = vmatpush1.msra.mxu0 0.0
  %1083 = vmatprep.subr.mxu0 0.0
  %1084 = vmatpush1.msra.mxu0 0.0
  %1085 = vmatprep.subr.mxu0 0.0
  %1086 = vmatpush1.msra.mxu0 0.0
  %1087 = vmatprep.mubr.f32.mxu0 0.0
  %1088 = vmatmul.mubr.f32.gmra.mrb[0].mxu0 %v1018
  %v1089 = vpop.f32.mrb[0].mxu0
  %v1090 = vadd.f32 %v1016, %v1089
  %v1091 = vpop.f32.mrb[0].mxu0
  %1092 = vmatprep.mubr.f32.mxu0 0.0
  %1093 = vmatmul.mubr.f32.gmra.mrb[0].mxu0 %v1021
  %v1094 = vpop.f32.mrb[0].mxu0
  %v1095 = vadd.f32 %v1016, %v1094
  %v1096 = vpop.f32.mrb[0].mxu0
  %1097 = vdwg.mxu0
  %vm1098 = vcmask 64512
  %v1100 = vsel %vm1098, %v1090, 0
  %v1103 = vsel %vm1098, %v1095, 0
  %1105 = vmatprep.subr.mxu0 0.0
  %1106 = vmatpush1.xpose.msra.mxu0 %v1100
  %1107 = vmatprep.subr.mxu0 0.0
  %1108 = vmatpush1.xpose.msra.mxu0 %v1103
  %1109 = vmatprep.subr.mxu0 0.0
  %1110 = vmatpush1.xpose.msra.mxu0 0.0
  %1111 = vmatprep.subr.mxu0 0.0
  %1112 = vmatpush1.xpose.msra.mxu0 0.0
  %1113 = vmatprep.subr.mxu0 0.0
  %1114 = vmatpush1.xpose.msra.mxu0 0.0
  %1115 = vmatprep.subr.mxu0 0.0
  %1116 = vmatpush1.xpose.msra.mxu0 0.0
  %1117 = vmatprep.subr.mxu0 0.0
  %1118 = vmatpush1.xpose.msra.mxu0 0.0
  %1119 = vmatprep.subr.mxu0 0.0
  %1120 = vmatpush1.xpose.msra.mxu0 0.0
  %1121 = vmatprep.subr.mxu0 0.0
  %1122 = vmatpush1.xpose.msra.mxu0 0.0
  %1123 = vmatprep.subr.mxu0 0.0
  %1124 = vmatpush1.xpose.msra.mxu0 0.0
  %1125 = vmatprep.subr.mxu0 0.0
  %1126 = vmatpush1.xpose.msra.mxu0 0.0
  %1127 = vmatprep.subr.mxu0 0.0
  %1128 = vmatpush1.xpose.msra.mxu0 0.0
  %1129 = vmatprep.subr.mxu0 0.0
  %1130 = vmatpush1.xpose.msra.mxu0 0.0
  %1131 = vmatprep.subr.mxu0 0.0
  %1132 = vmatpush1.xpose.msra.mxu0 0.0
  %1133 = vmatprep.subr.mxu0 0.0
  %1134 = vmatpush1.xpose.msra.mxu0 0.0
  %1135 = vmatprep.subr.mxu0 0.0
  %1136 = vmatpush1.xpose.msra.mxu0 0.0
  %1137 = vmatprep.subr.mxu0 0.0
  %1138 = vmatpush1.xpose.msra.mxu0 0.0
  %1139 = vmatprep.subr.mxu0 0.0
  %1140 = vmatpush1.xpose.msra.mxu0 0.0
  %1141 = vmatprep.subr.mxu0 0.0
  %1142 = vmatpush1.xpose.msra.mxu0 0.0
  %1143 = vmatprep.subr.mxu0 0.0
  %1144 = vmatpush1.xpose.msra.mxu0 0.0
  %1145 = vmatprep.subr.mxu0 0.0
  %1146 = vmatpush1.xpose.msra.mxu0 0.0
  %1147 = vmatprep.subr.mxu0 0.0
  %1148 = vmatpush1.xpose.msra.mxu0 0.0
  %1149 = vmatprep.subr.mxu0 0.0
  %1150 = vmatpush1.xpose.msra.mxu0 0.0
  %1151 = vmatprep.subr.mxu0 0.0
  %1152 = vmatpush1.xpose.msra.mxu0 0.0
  %1153 = vmatprep.subr.mxu0 0.0
  %1154 = vmatpush1.xpose.msra.mxu0 0.0
  %1155 = vmatprep.subr.mxu0 0.0
  %1156 = vmatpush1.xpose.msra.mxu0 0.0
  %1157 = vmatprep.subr.mxu0 0.0
  %1158 = vmatpush1.xpose.msra.mxu0 0.0
  %1159 = vmatprep.subr.mxu0 0.0
  %1160 = vmatpush1.xpose.msra.mxu0 0.0
  %1161 = vmatprep.subr.mxu0 0.0
  %1162 = vmatpush1.xpose.msra.mxu0 0.0
  %1163 = vmatprep.subr.mxu0 0.0
  %1164 = vmatpush1.xpose.msra.mxu0 0.0
  %1165 = vmatprep.subr.mxu0 0.0
  %1166 = vmatpush1.xpose.msra.mxu0 0.0
  %1167 = vmatprep.subr.mxu0 0.0
  %1168 = vmatpush1.xpose.msra.mxu0 0.0
  %1169 = vmatprep.mubr.f32.mxu0 0.0
  %1170 = vmatmul.mubr.f32.gmra.mrb[0].mxu0 %v1100
  %v1171 = vpop.f32.mrb[0].mxu0
  %v1172 = vadd.f32 0.0, %v1171
  %v1173 = vpop.f32.mrb[0].mxu0
  %1174 = vmatprep.mubr.f32.mxu0 0.0
  %1175 = vmatmul.mubr.f32.gmra.mrb[0].mxu0 %v1103
  %v1176 = vpop.f32.mrb[0].mxu0
  %v1177 = vadd.f32 0.0, %v1176
  %v1178 = vpop.f32.mrb[0].mxu0
  %1179 = vdwg.mxu0
  %vm1180 = vcmp.gt.f32.partialorder %v1172, 0.0
  %vm1181 = vcmp.gt.f32.partialorder %v1177, 0.0
  %v1182 = vmul.f32 %v1172, 0.1
  %v1183 = vmul.f32 %v1177, 0.1
  %v1184 = vsel %vm1180, %v1172, %v1182
  %v1185 = vsel %vm1181, %v1177, %v1183
  %v1186 = vmul.f32 %v1184, %v16
  %v1187 = vmul.f32 %v1185, %v17
  %v1188 = vadd.f32 %v1186, %v19
  %v1189 = vadd.f32 %v1187, %v20
  %v1190 = vsel %vm43, %v1188, -inf
  %1191 = vmax.xlane.f32.xlu0 %v1190
  %v1192 = vpop.xlane.xlu0 %1191
  %v1193 = vsel %vm43, %v1189, -inf
  %1194 = vmax.xlane.f32.xlu0 %v1193
  %v1195 = vpop.xlane.xlu0 %1194
  %v1196 = vsub.f32 %v1188, %v1192
  %v1197 = vsub.f32 %v1189, %v1195
  %v1198 = vmul.f32 %v1196, 1.442695
  %v1199 = vpow.pop %v1198
  %v1200 = vmul.f32 %v1197, 1.442695
  %v1201 = vpow.pop %v1200
  %v1202 = vsel %vm43, %v1199, 0.0
  %1203 = vadd.xlane.f32.xlu0 %v1202
  %v1204 = vpop.xlane.xlu0 %1203
  %v1205 = vsel %vm43, %v1201, 0.0
  %1206 = vadd.xlane.f32.xlu0 %v1205
  %v1207 = vpop.xlane.xlu0 %1206
  %v1208 = vrcp.pop %v1204
  %v1209 = vmul.f32 %v1199, %v1208
  %v1210 = vrcp.pop %v1207
  %v1211 = vmul.f32 %v1201, %v1210
  %v1213 = vsel %vm43, %v1209, 0
  %v1216 = vsel %vm43, %v1211, 0
  %1218 = vmatprep.subr.mxu0 0.0
  %1219 = vmatpush1.msra.mxu0 %v1090
  %1220 = vmatprep.subr.mxu0 0.0
  %1221 = vmatpush1.msra.mxu0 %v1095
  %1222 = vmatprep.subr.mxu0 0.0
  %1223 = vmatpush1.msra.mxu0 0.0
  %1224 = vmatprep.subr.mxu0 0.0
  %1225 = vmatpush1.msra.mxu0 0.0
  %1226 = vmatprep.subr.mxu0 0.0
  %1227 = vmatpush1.msra.mxu0 0.0
  %1228 = vmatprep.subr.mxu0 0.0
  %1229 = vmatpush1.msra.mxu0 0.0
  %1230 = vmatprep.subr.mxu0 0.0
  %1231 = vmatpush1.msra.mxu0 0.0
  %1232 = vmatprep.subr.mxu0 0.0
  %1233 = vmatpush1.msra.mxu0 0.0
  %1234 = vmatprep.subr.mxu0 0.0
  %1235 = vmatpush1.msra.mxu0 0.0
  %1236 = vmatprep.subr.mxu0 0.0
  %1237 = vmatpush1.msra.mxu0 0.0
  %1238 = vmatprep.subr.mxu0 0.0
  %1239 = vmatpush1.msra.mxu0 0.0
  %1240 = vmatprep.subr.mxu0 0.0
  %1241 = vmatpush1.msra.mxu0 0.0
  %1242 = vmatprep.subr.mxu0 0.0
  %1243 = vmatpush1.msra.mxu0 0.0
  %1244 = vmatprep.subr.mxu0 0.0
  %1245 = vmatpush1.msra.mxu0 0.0
  %1246 = vmatprep.subr.mxu0 0.0
  %1247 = vmatpush1.msra.mxu0 0.0
  %1248 = vmatprep.subr.mxu0 0.0
  %1249 = vmatpush1.msra.mxu0 0.0
  %1250 = vmatprep.subr.mxu0 0.0
  %1251 = vmatpush1.msra.mxu0 0.0
  %1252 = vmatprep.subr.mxu0 0.0
  %1253 = vmatpush1.msra.mxu0 0.0
  %1254 = vmatprep.subr.mxu0 0.0
  %1255 = vmatpush1.msra.mxu0 0.0
  %1256 = vmatprep.subr.mxu0 0.0
  %1257 = vmatpush1.msra.mxu0 0.0
  %1258 = vmatprep.subr.mxu0 0.0
  %1259 = vmatpush1.msra.mxu0 0.0
  %1260 = vmatprep.subr.mxu0 0.0
  %1261 = vmatpush1.msra.mxu0 0.0
  %1262 = vmatprep.subr.mxu0 0.0
  %1263 = vmatpush1.msra.mxu0 0.0
  %1264 = vmatprep.subr.mxu0 0.0
  %1265 = vmatpush1.msra.mxu0 0.0
  %1266 = vmatprep.subr.mxu0 0.0
  %1267 = vmatpush1.msra.mxu0 0.0
  %1268 = vmatprep.subr.mxu0 0.0
  %1269 = vmatpush1.msra.mxu0 0.0
  %1270 = vmatprep.subr.mxu0 0.0
  %1271 = vmatpush1.msra.mxu0 0.0
  %1272 = vmatprep.subr.mxu0 0.0
  %1273 = vmatpush1.msra.mxu0 0.0
  %1274 = vmatprep.subr.mxu0 0.0
  %1275 = vmatpush1.msra.mxu0 0.0
  %1276 = vmatprep.subr.mxu0 0.0
  %1277 = vmatpush1.msra.mxu0 0.0
  %1278 = vmatprep.subr.mxu0 0.0
  %1279 = vmatpush1.msra.mxu0 0.0
  %1280 = vmatprep.subr.mxu0 0.0
  %1281 = vmatpush1.msra.mxu0 0.0
  %1282 = vmatprep.mubr.f32.mxu0 0.0
  %1283 = vmatmul.mubr.f32.gmra.mrb[0].mxu0 %v1213
  %v1284 = vpop.f32.mrb[0].mxu0
  %v1285 = vadd.f32 0.0, %v1284
  %v1286 = vpop.f32.mrb[0].mxu0
  %1287 = vmatprep.mubr.f32.mxu0 0.0
  %1288 = vmatmul.mubr.f32.gmra.mrb[0].mxu0 %v1216
  %v1289 = vpop.f32.mrb[0].mxu0
  %v1290 = vadd.f32 0.0, %v1289
  %v1291 = vpop.f32.mrb[0].mxu0
  %1292 = vdwg.mxu0
  %1294 = vrot.lane.b32.xlu0 %v1290, 8
  %v1295 = vpop.permute.xlu0 %1294
  %v1297 = vsel %vm1098, %v1285, %v1295
  %1298 = vst.msk [vmem:[%s3] sm:$0xff] %vm43, %v1297
  // Predicated region
  $region14: #{gat_forward.1} parent=0 // pred_check
    _
  $region15: #{gat_forward.1} parent=0 // pred_check_branch
    %1300 = sbr.rel (0) target = $region17
  $region16: #{gat_forward.1} parent=0 // pred_region
    _
  $region17: #{gat_forward.1} parent=0 // pred_fallthru
    _
  // Predicated region
  $region18: #{gat_forward.1} parent=0 // pred_check
    _
  $region19: #{gat_forward.1} parent=0 // pred_check_branch
    %1302 = sbr.rel (0) target = $region21
  $region20: #{gat_forward.1} parent=0 // pred_region
    _
  $region21: #{gat_forward.1} parent=0 // pred_fallthru
    _

</llo_original>
